<compile_context>
chip_gen: v7x
topology: tpu7x:2x2x1
jax: 0.10.0
libtpu: 0.0.40
codegen_flags: <defaults>
</compile_context>

<pallas_src>
import functools

import jax
import jax.numpy as jnp
from jax.experimental import pallas as pl
from jax.experimental.pallas import tpu as pltpu


# ----------------------------------------------------------------------------
# Small helpers.
# ----------------------------------------------------------------------------
def _round_up(n, m):
    return (n + m - 1) // m * m


def _pad_rows(x, n_pad, value=0):
    pad = n_pad - x.shape[0]
    if pad:
        x = jnp.pad(x, ((0, pad),) + ((0, 0),) * (x.ndim - 1), constant_values=value)
    return x


def _log_softmax(x):
    m = jnp.max(x, axis=1, keepdims=True)
    s = x - m
    return s - jnp.log(jnp.sum(jnp.exp(s), axis=1, keepdims=True))


_VMEM_LIMIT = 32 * 1024 * 1024   # safe on v5e / v6e / v7x


# ----------------------------------------------------------------------------
# Kernel 1: per-scale fusion (fusion_to_single_KD hot path).
# ----------------------------------------------------------------------------
def fusion_kernel(vf_ref, pf_ref,
                  wv_ref, bv_ref,            # wide voxel-side W = [w3a | w1v | w3v]
                  wp_ref, bp_ref,            # wide point-side W = [wpa | w1p | w3p]
                  w3b_ref, b3b_ref,          # multihead_3d_classifier layer 2
                  wpb_ref, bpb_ref,          # point_classifier layer 2
                  w2_ref, b2_ref,            # fcs2 (gate)
                  wfa_ref, bfa_ref, wfb_ref, bfb_ref,   # multihead_fuse_classifier
                  out_ref,                   # packed (tn, 3C)
                  *, hid, d3):
    f32 = jnp.float32
    bf16 = jnp.bfloat16

    vf = vf_ref[...].astype(bf16)
    pf = pf_ref[...].astype(bf16)

    # One wide matmul per shared input (merges 3 narrow matmuls each).
    yv = jnp.dot(vf, wv_ref[...], preferred_element_type=f32) + bv_ref[...]
    yp = jnp.dot(pf, wp_ref[...], preferred_element_type=f32) + bp_ref[...]

    # 3D voxel classifier head: relu(vf@w3a + b3a) @ w3b + b3b
    h3 = jnp.maximum(yv[:, :d3], 0.0)
    voxel_pred = (jnp.dot(h3.astype(bf16), w3b_ref[...],
                          preferred_element_type=f32) + b3b_ref[...])

    # point classifier head: relu(pf@wpa + bpa) @ wpb + bpb
    hp = jnp.maximum(yp[:, :hid], 0.0)
    point_pred = (jnp.dot(hp.astype(bf16), wpb_ref[...],
                          preferred_element_type=f32) + bpb_ref[...])

    # entropy-based confidence weighting (log-space softmax, EUP reciprocal)
    def neg_plogp_sum(logits):
        m = jnp.max(logits, axis=1, keepdims=True)
        s = logits - m
        e = jnp.exp(s)
        z = jnp.sum(e, axis=1, keepdims=True)
        logp = s - jnp.log(z)
        p = e * pl.reciprocal(z, approx=True)
        return -jnp.sum(p * logp, axis=1, keepdims=True)

    ev = jnp.exp(-neg_plogp_sum(voxel_pred))
    ep = jnp.exp(-neg_plogp_sum(point_pred))
    inv = pl.reciprocal(ep + ev, approx=True)
    w_point = ep * inv
    w_voxel = ev * inv

    # gated fusion (fcs1 / fcs2 / fcs3), concat linear = sum of split matmuls
    comp = yv[:, d3:d3 + hid] + yp[:, hid:2 * hid]           # fcs1(feat_cat)
    fc3 = yv[:, d3 + hid:d3 + 2 * hid] + yp[:, 2 * hid:3 * hid]  # fcs3(feat_cat)
    z2 = (jnp.dot(comp.astype(bf16), w2_ref[...],
                  preferred_element_type=f32) + b2_ref[...])
    feat_weight = pl.reciprocal(1.0 + jnp.exp(-z2), approx=True)   # sigmoid
    fuse_feat = jnp.maximum(comp * feat_weight, 0.0) + fc3

    # fuse classifier head
    hf = jnp.maximum(
        jnp.dot(fuse_feat.astype(bf16), wfa_ref[...],
                preferred_element_type=f32) + bfa_ref[...], 0.0)
    fuse_feat_pred = (jnp.dot(hf.astype(bf16), wfb_ref[...],
                              preferred_element_type=f32) + bfb_ref[...])

    fuse_prob_pred = w_point * point_pred + w_voxel * voxel_pred

    out_ref[...] = jnp.concatenate(
        [voxel_pred, fuse_feat_pred, fuse_prob_pred], axis=1)


def fusion_pallas(voxel_feat, pts_feat, p, *, tn=512):
    N, H = voxel_feat.shape
    C = p['w3b'].shape[1]
    D3 = p['w3a'].shape[1]
    bf16, f32 = jnp.bfloat16, jnp.float32

    # Pre-concat the shared-input first-layer weights into one wide matrix
    # per input; biases for the point-side copies of fcs1/fcs3 are zero (the
    # real b1/b3 are carried on the voxel side so they are added once).
    wv = jnp.concatenate([p['w3a'], p['w1v'], p['w3v']], axis=1).astype(bf16)
    bv = jnp.concatenate([p['b3a'], p['b1'], p['b3']], axis=1).astype(f32)
    wp = jnp.concatenate([p['wpa'], p['w1p'], p['w3p']], axis=1).astype(bf16)
    bp = jnp.concatenate([p['bpa'], jnp.zeros_like(p['b1']),
                          jnp.zeros_like(p['b3'])], axis=1).astype(f32)

    weights = [wv, bv, wp, bp,
               p['w3b'].astype(bf16), p['b3b'].astype(f32),
               p['wpb'].astype(bf16), p['bpb'].astype(f32),
               p['w2'].astype(bf16), p['b2'].astype(f32),
               p['wfa'].astype(bf16), p['bfa'].astype(f32),
               p['wfb'].astype(bf16), p['bfb'].astype(f32)]

    tn = max(8, min(tn, _round_up(N, 8)))       # big tiles; cap for tiny inputs
    n_pad = _round_up(N, tn)
    vf = _pad_rows(voxel_feat, n_pad)
    pf = _pad_rows(pts_feat, n_pad)

    feat_spec = pl.BlockSpec((tn, H), lambda i: (i, 0))
    weight_specs = [pl.BlockSpec(w.shape, lambda i: (0, 0)) for w in weights]
    out_spec = pl.BlockSpec((tn, 3 * C), lambda i: (i, 0))

    packed = pl.pallas_call(
        functools.partial(fusion_kernel, hid=H, d3=D3),
        grid=(n_pad // tn,),
        in_specs=[feat_spec, feat_spec] + weight_specs,
        out_specs=out_spec,
        out_shape=jax.ShapeDtypeStruct((n_pad, 3 * C), f32),
        compiler_params=pltpu.CompilerParams(
            dimension_semantics=("parallel",),
            vmem_limit_bytes=_VMEM_LIMIT),
    )(vf, pf, *weights)
    return packed[:N]        # [voxel_pred | fuse_feat_pred | fuse_prob_pred]


# ----------------------------------------------------------------------------
# Kernel 2: two-layer MLP classifier (Linear -> ReLU -> Linear).
# ----------------------------------------------------------------------------
def mlp2_kernel(x_ref, w1_ref, b1_ref, w2_ref, b2_ref, o_ref):
    bf16, f32 = jnp.bfloat16, jnp.float32
    x = x_ref[...].astype(bf16)
    h = jnp.maximum(
        jnp.dot(x, w1_ref[...], preferred_element_type=f32) + b1_ref[...], 0.0)
    o_ref[...] = (jnp.dot(h.astype(bf16), w2_ref[...],
                          preferred_element_type=f32) + b2_ref[...])


def mlp2_pallas(x, w1, b1, w2, b2, *, tm=512):
    M, H = x.shape
    C = w2.shape[1]
    ws = [w1.astype(jnp.bfloat16), b1.astype(jnp.float32),
          w2.astype(jnp.bfloat16), b2.astype(jnp.float32)]
    tm = max(8, min(tm, _round_up(M, 8)))
    m_pad = _round_up(M, tm)
    xp = _pad_rows(x, m_pad)
    out = pl.pallas_call(
        mlp2_kernel,
        grid=(m_pad // tm,),
        in_specs=[pl.BlockSpec((tm, H), lambda i: (i, 0))] +
                 [pl.BlockSpec(w.shape, lambda i: (0, 0)) for w in ws],
        out_specs=pl.BlockSpec((tm, C), lambda i: (i, 0)),
        out_shape=jax.ShapeDtypeStruct((m_pad, C), jnp.float32),
        compiler_params=pltpu.CompilerParams(
            dimension_semantics=("parallel",),
            vmem_limit_bytes=_VMEM_LIMIT),
    )(xp, *ws)
    return out[:M]


# ----------------------------------------------------------------------------
# Kernel 3: weighted cross-entropy with ignore_index, tiled over N with
#           VMEM accumulators (num / den), finalize on last step.
# ----------------------------------------------------------------------------
def ce_kernel(logits_ref, labels_ref, cw_ref, out_ref, num_acc, den_acc,
              *, ignore, col, ncls):
    step = pl.program_id(0)

    @pl.when(step == 0)
    def _():
        num_acc[...] = jnp.zeros_like(num_acc)
        den_acc[...] = jnp.zeros_like(den_acc)

    logits = logits_ref[...][:, col:col + ncls].astype(jnp.float32)
    labels = labels_ref[...]                             # (tile, 1) int32
    cw = cw_ref[...]                                     # (1, C)
    logp = _log_softmax(logits)
    cls_ids = jax.lax.broadcasted_iota(jnp.int32, logits.shape, 1)
    onehot = (cls_ids == labels).astype(jnp.float32)
    nll = -jnp.sum(onehot * logp, axis=1, keepdims=True)       # (tile, 1)
    wi = jnp.sum(onehot * cw, axis=1, keepdims=True)           # (tile, 1)
    valid = (labels != ignore).astype(jnp.float32)             # (tile, 1)
    num_acc[...] += jnp.sum(nll * wi * valid, axis=0, keepdims=True)
    den_acc[...] += jnp.sum(wi * valid, axis=0, keepdims=True)

    @pl.when(step == pl.num_programs(0) - 1)
    def _():
        out_ref[...] = num_acc[...] / jnp.maximum(den_acc[...], 1e-12)


def ce_loss_pallas(logits, labels, class_weights, ignore, *, col=0, tile=1024):
    N, W = logits.shape
    ncls = class_weights.shape[0]
    labels2d = labels.reshape(N, 1).astype(jnp.int32)
    cw = class_weights.reshape(1, ncls).astype(jnp.float32)

    tile = max(8, min(tile, _round_up(N, 8)))
    n_pad = _round_up(N, tile)
    logits_p = _pad_rows(logits, n_pad)
    labels_p = _pad_rows(labels2d, n_pad, value=ignore)   # padded rows are ignored

    out = pl.pallas_call(
        functools.partial(ce_kernel, ignore=ignore, col=col, ncls=ncls),
        grid=(n_pad // tile,),
        in_specs=[pl.BlockSpec((tile, W), lambda i: (i, 0)),
                  pl.BlockSpec((tile, 1), lambda i: (i, 0)),
                  pl.BlockSpec((1, ncls), lambda i: (0, 0))],
        out_specs=pl.BlockSpec((1, 1), lambda i: (0, 0)),
        out_shape=jax.ShapeDtypeStruct((1, 1), jnp.float32),
        scratch_shapes=[pltpu.VMEM((1, 1), jnp.float32),
                        pltpu.VMEM((1, 1), jnp.float32)],
        compiler_params=pltpu.CompilerParams(
            dimension_semantics=("arbitrary",),
            vmem_limit_bytes=_VMEM_LIMIT),
    )(logits_p, labels_p, cw)
    return out[0, 0]


# ----------------------------------------------------------------------------
# Kernel 4: both KL terms of one scale in one pass.
#   kl_div(log_softmax(voxel), softmax(fuse_feat)) +
#   kl_div(log_softmax(voxel), softmax(fuse_prob)),  reduction='mean' (÷ N*C).
# Input is the lane-packed (N, 3C) prediction block from fusion_pallas.
# ----------------------------------------------------------------------------
def kl2_kernel(packed_ref, out_ref, acc_ref, *, ncls, inv_n_elems):
    step = pl.program_id(0)

    @pl.when(step == 0)
    def _():
        acc_ref[...] = jnp.zeros_like(acc_ref)

    x = packed_ref[...].astype(jnp.float32)
    logp = _log_softmax(x[:, 0:ncls])               # shared input, computed once
    logt1 = _log_softmax(x[:, ncls:2 * ncls])
    logt2 = _log_softmax(x[:, 2 * ncls:3 * ncls])
    pw = jnp.exp(logt1) * (logt1 - logp) + jnp.exp(logt2) * (logt2 - logp)
    rowsum = jnp.sum(pw, axis=1, keepdims=True)
    acc_ref[...] += jnp.sum(rowsum, axis=0, keepdims=True)

    @pl.when(step == pl.num_programs(0) - 1)
    def _():
        out_ref[...] = acc_ref[...] * inv_n_elems


def kl_div2_pallas(packed_preds, *, tile=1024):
    N, W = packed_preds.shape
    ncls = W // 3
    tile = max(8, min(tile, _round_up(N, 8)))
    n_pad = _round_up(N, tile)
    xp = _pad_rows(packed_preds, n_pad)   # zero-padded rows contribute exactly 0
    out = pl.pallas_call(
        functools.partial(kl2_kernel, ncls=ncls, inv_n_elems=1.0 / float(N * ncls)),
        grid=(n_pad // tile,),
        in_specs=[pl.BlockSpec((tile, W), lambda i: (i, 0))],
        out_specs=pl.BlockSpec((1, 1), lambda i: (0, 0)),
        out_shape=jax.ShapeDtypeStruct((1, 1), jnp.float32),
        scratch_shapes=[pltpu.VMEM((1, 1), jnp.float32)],
        compiler_params=pltpu.CompilerParams(
            dimension_semantics=("arbitrary",),
            vmem_limit_bytes=_VMEM_LIMIT),
    )(xp)
    return out[0, 0]


# ----------------------------------------------------------------------------
# Lovasz-softmax loss (classes='present', ignore handled via masking).
# TODO(synk): data-dependent sort has no clean Pallas equivalent; kept in JAX.
# ----------------------------------------------------------------------------
def lovasz_softmax_jax(probas, labels, ignore):
    valid = labels != ignore
    C = probas.shape[1]
    losses, present = [], []
    for c in range(C):
        fg = jnp.where(valid, (labels == c).astype(jnp.float32), 0.0)
        err = jnp.where(valid, jnp.abs(fg - probas[:, c]), 0.0)
        order = jnp.argsort(-err)
        err_s = err[order]
        fg_s = fg[order]
        gts = jnp.sum(fg_s)
        inter = gts - jnp.cumsum(fg_s)
        union = gts + jnp.cumsum(1.0 - fg_s)
        jac = 1.0 - inter / union
        jac = jnp.concatenate([jac[:1], jac[1:] - jac[:-1]], axis=0)
        losses.append(jnp.dot(err_s, jac))
        present.append((gts > 0).astype(jnp.float32))
    losses = jnp.stack(losses)
    present = jnp.stack(present)
    return jnp.sum(losses * present) / jnp.maximum(jnp.sum(present), 1.0)


# ----------------------------------------------------------------------------
# Module logic (glue around the kernels).
# ----------------------------------------------------------------------------
def seg_loss_packed(packed, col, labels, class_weights, ignore):
    C = class_weights.shape[0]
    ce = ce_loss_pallas(packed, labels, class_weights, ignore, col=col)
    probs = jax.nn.softmax(packed[:, col:col + C], axis=1)
    lov = lovasz_softmax_jax(probs, labels, ignore)
    return ce + lov


def fusion_to_single_kd(p_scale, data, idx, scale, class_weights, ignore, lambda_xm):
    voxel_feat = data[f'layer_{idx}']['voxel_feat']
    pts_feat = data[f'pfeat_scale{scale}']
    voxel_label = data[f'scale_{scale}']['voxel_label']
    C = class_weights.shape[0]

    # packed = [voxel_pred | fuse_feat_pred | fuse_prob_pred]
    packed = fusion_pallas(voxel_feat, pts_feat, p_scale)

    fuse_feat_loss = seg_loss_packed(packed, C, voxel_label, class_weights, ignore)
    fuse_prob_loss = seg_loss_packed(packed, 2 * C, voxel_label, class_weights, ignore)
    loss = fuse_feat_loss + fuse_prob_loss

    # TODO(synk): KL targets are not stop_gradient'ed inside the fused kernel
    # (forward value identical to the PyTorch .detach(); only grads differ).
    xm_loss = kl_div2_pallas(packed)
    return loss + xm_loss * lambda_xm


def xmodalkd_forward(params, data, *, scale_list, class_weights, ignore, lambda_xm):
    loss = jnp.float32(0.0)
    for idx in range(len(params['scales'])):
        scale = scale_list[idx]
        loss = loss + fusion_to_single_kd(
            params['scales'][idx], data, idx, scale, class_weights, ignore, lambda_xm)

    # Final point classifier: the MLP is row-wise, so run it on the unique
    # voxel features and gather the (C-wide) logits with coors_inv afterwards
    # — exact same result as classifier(pfeat[coors_inv]) but avoids an
    # [M, H]-sized gathered copy through HBM.
    seg_logits_unique = mlp2_pallas(data['pfeat_scale1'], params['cls_w1'],
                                    params['cls_b1'], params['cls_w2'],
                                    params['cls_b2'])
    coors_inv = data['scale_1']['coors_inv']
    point_seg_logits = jnp.take(seg_logits_unique, coors_inv, axis=0)
    # TODO(synk): the coors_inv gather stays in XLA; a manual-DMA gather inside
    # the loss kernel would remove this small extra pass.
    loss = loss + seg_loss_packed(point_seg_logits, 0, data['labels'],
                                  class_weights, ignore)

    out = dict(data)
    out['loss'] = data['loss'] + loss
    return out


# ----------------------------------------------------------------------------
# Deterministic parameter init (PyTorch-Linear-like uniform; weights stored
# transposed as [in, out], biases as [1, out]).
# ----------------------------------------------------------------------------
def init_linear(key, fan_in, fan_out):
    kw, kb = jax.random.split(key)
    bound = float(fan_in) ** -0.5
    w = jax.random.uniform(kw, (fan_in, fan_out), jnp.float32, -bound, bound)
    b = jax.random.uniform(kb, (1, fan_out), jnp.float32, -bound, bound)
    return w, b


def init_scale_params(key, H, C):
    ks = jax.random.split(key, 9)
    p = {}
    p['w3a'], p['b3a'] = init_linear(ks[0], H, 128)     # multihead_3d_classifier L1
    p['w3b'], p['b3b'] = init_linear(ks[1], 128, C)     # multihead_3d_classifier L2
    p['wpa'], p['bpa'] = init_linear(ks[2], H, H)       # point_classifier L1
    p['wpb'], p['bpb'] = init_linear(ks[3], H, C)       # point_classifier L2
    w1, p['b1'] = init_linear(ks[4], 2 * H, H)          # fcs1
    p['w1v'], p['w1p'] = w1[:H], w1[H:]
    p['w2'], p['b2'] = init_linear(ks[5], H, H)         # fcs2
    w3, p['b3'] = init_linear(ks[6], 2 * H, H)          # fcs3
    p['w3v'], p['w3p'] = w3[:H], w3[H:]
    p['wfa'], p['bfa'] = init_linear(ks[7], H, 128)     # multihead_fuse_classifier L1
    p['wfb'], p['bfb'] = init_linear(ks[8], 128, C)     # multihead_fuse_classifier L2
    return p


if __name__ == "__main__":
    # ---- synthetic config (mirrors module __init__) ----
    H = 32                       # hiden_size
    C = 8                        # num_classes
    cfg_scale_list = [2, 4]      # config scale_list
    num_scales = len(cfg_scale_list)
    scale_list = [1] + cfg_scale_list   # self.scale_list
    lambda_xm = 0.05
    ignore_label = 0

    # seg_labelweights = (max(w)/w)^(1/3), w = counts / sum(counts)
    counts = jnp.array([10., 200., 150., 300., 80., 120., 60., 90.], jnp.float32)
    w_norm = counts / jnp.sum(counts)
    class_weights = (jnp.max(w_norm) / w_norm) ** (1.0 / 3.0)

    # ---- parameters ----
    key = jax.random.PRNGKey(0)
    kp, kd = jax.random.split(key)
    kscales = jax.random.split(kp, num_scales + 2)
    params = {'scales': [init_scale_params(kscales[i], H, C) for i in range(num_scales)]}
    params['cls_w1'], params['cls_b1'] = init_linear(kscales[-2], H, H)
    params['cls_w2'], params['cls_b2'] = init_linear(kscales[-1], H, C)

    # ---- synthetic data_dict (small shapes) ----
    N0, N1, M = 64, 32, 128
    dks = jax.random.split(kd, 8)
    data = {
        'layer_0': {'voxel_feat': jax.random.normal(dks[0], (N0, H), jnp.float32)},
        'layer_1': {'voxel_feat': jax.random.normal(dks[1], (N1, H), jnp.float32)},
        'pfeat_scale1': jax.random.normal(dks[2], (N0, H), jnp.float32),
        'pfeat_scale2': jax.random.normal(dks[3], (N1, H), jnp.float32),
        'scale_1': {
            'voxel_label': jax.random.randint(dks[4], (N0,), 0, C, jnp.int32),
            'coors_inv': jax.random.randint(dks[5], (M,), 0, N0, jnp.int32),
        },
        'scale_2': {
            'voxel_label': jax.random.randint(dks[6], (N1,), 0, C, jnp.int32),
        },
        'labels': jax.random.randint(dks[7], (M,), 0, C, jnp.int32),
        'loss': jnp.float32(0.0),
    }

    out = xmodalkd_forward(params, data, scale_list=scale_list,
                           class_weights=class_weights, ignore=ignore_label,
                           lambda_xm=lambda_xm)
    loss = jax.block_until_ready(out['loss'])
    assert jnp.isfinite(loss), "loss is not finite"
    print("KERNEL_OK")
</pallas_src>

<mosaic_0001>
module attributes {stable_mosaic.version = 11 : i64} {
  func.func @fusion_kernel(%arg0: i32, %arg1: memref<64x32xf32, #tpu.memory_space<vmem>>, %arg2: memref<64x32xf32, #tpu.memory_space<vmem>>, %arg3: memref<32x192xbf16, #tpu.memory_space<vmem>>, %arg4: memref<1x192xf32, #tpu.memory_space<vmem>>, %arg5: memref<32x96xbf16, #tpu.memory_space<vmem>>, %arg6: memref<1x96xf32, #tpu.memory_space<vmem>>, %arg7: memref<128x8xbf16, #tpu.memory_space<vmem>>, %arg8: memref<1x8xf32, #tpu.memory_space<vmem>>, %arg9: memref<32x8xbf16, #tpu.memory_space<vmem>>, %arg10: memref<1x8xf32, #tpu.memory_space<vmem>>, %arg11: memref<32x32xbf16, #tpu.memory_space<vmem>>, %arg12: memref<1x32xf32, #tpu.memory_space<vmem>>, %arg13: memref<32x128xbf16, #tpu.memory_space<vmem>>, %arg14: memref<1x128xf32, #tpu.memory_space<vmem>>, %arg15: memref<128x8xbf16, #tpu.memory_space<vmem>>, %arg16: memref<1x8xf32, #tpu.memory_space<vmem>>, %arg17: memref<64x24xf32, #tpu.memory_space<vmem>>) attributes {dimension_semantics = [#tpu.dimension_semantics<parallel>], iteration_bounds = array<i64: 1>, scalar_prefetch = 0 : i64, scratch_operands = 0 : i64, tpu.core_type = #tpu.core_type<tc>, window_params = [{transform_indices = @transform_0, window_bounds = array<i64: 64, 32>}, {transform_indices = @transform_1, window_bounds = array<i64: 64, 32>}, {pipeline_mode = #tpu.pipeline_mode<synchronous>, transform_indices = @transform_2, window_bounds = array<i64: 32, 192>}, {pipeline_mode = #tpu.pipeline_mode<synchronous>, transform_indices = @transform_3, window_bounds = array<i64: 1, 192>}, {pipeline_mode = #tpu.pipeline_mode<synchronous>, transform_indices = @transform_4, window_bounds = array<i64: 32, 96>}, {pipeline_mode = #tpu.pipeline_mode<synchronous>, transform_indices = @transform_5, window_bounds = array<i64: 1, 96>}, {pipeline_mode = #tpu.pipeline_mode<synchronous>, transform_indices = @transform_6, window_bounds = array<i64: 128, 8>}, {pipeline_mode = #tpu.pipeline_mode<synchronous>, transform_indices = @transform_7, window_bounds = array<i64: 1, 8>}, {pipeline_mode = #tpu.pipeline_mode<synchronous>, transform_indices = @transform_8, window_bounds = array<i64: 32, 8>}, {pipeline_mode = #tpu.pipeline_mode<synchronous>, transform_indices = @transform_9, window_bounds = array<i64: 1, 8>}, {pipeline_mode = #tpu.pipeline_mode<synchronous>, transform_indices = @transform_10, window_bounds = array<i64: 32, 32>}, {pipeline_mode = #tpu.pipeline_mode<synchronous>, transform_indices = @transform_11, window_bounds = array<i64: 1, 32>}, {pipeline_mode = #tpu.pipeline_mode<synchronous>, transform_indices = @transform_12, window_bounds = array<i64: 32, 128>}, {pipeline_mode = #tpu.pipeline_mode<synchronous>, transform_indices = @transform_13, window_bounds = array<i64: 1, 128>}, {pipeline_mode = #tpu.pipeline_mode<synchronous>, transform_indices = @transform_14, window_bounds = array<i64: 128, 8>}, {pipeline_mode = #tpu.pipeline_mode<synchronous>, transform_indices = @transform_15, window_bounds = array<i64: 1, 8>}, {transform_indices = @transform_16, window_bounds = array<i64: 64, 24>}]} {
    %c0 = arith.constant 0 : index
    %c0_0 = arith.constant 0 : index
    %0 = vector.load %arg1[%c0, %c0_0] : memref<64x32xf32, #tpu.memory_space<vmem>>, vector<64x32xf32>
    %1 = arith.truncf %0 : vector<64x32xf32> to vector<64x32xbf16>
    %c0_1 = arith.constant 0 : index
    %c0_2 = arith.constant 0 : index
    %2 = vector.load %arg2[%c0_1, %c0_2] : memref<64x32xf32, #tpu.memory_space<vmem>>, vector<64x32xf32>
    %3 = arith.truncf %2 : vector<64x32xf32> to vector<64x32xbf16>
    %c0_3 = arith.constant 0 : index
    %c0_4 = arith.constant 0 : index
    %4 = vector.load %arg3[%c0_3, %c0_4] : memref<32x192xbf16, #tpu.memory_space<vmem>>, vector<32x192xbf16>
    %cst = arith.constant dense<0.000000e+00> : vector<64x192xf32>
    %5 = tpu.matmul %1, %4, %cst {dimension_numbers = #tpu.dot_dimension_numbers<[1], [0], [0], [1], [0, 0, 1, 1], [], []>} : vector<64x32xbf16>, vector<32x192xbf16>, vector<64x192xf32> -> vector<64x192xf32>
    %c0_5 = arith.constant 0 : index
    %c0_6 = arith.constant 0 : index
    %6 = vector.load %arg4[%c0_5, %c0_6] : memref<1x192xf32, #tpu.memory_space<vmem>>, vector<1x192xf32>
    %7 = vector.broadcast %6 : vector<1x192xf32> to vector<64x192xf32>
    %8 = arith.addf %5, %7 : vector<64x192xf32>
    %c0_7 = arith.constant 0 : index
    %c0_8 = arith.constant 0 : index
    %9 = vector.load %arg5[%c0_7, %c0_8] : memref<32x96xbf16, #tpu.memory_space<vmem>>, vector<32x96xbf16>
    %cst_9 = arith.constant dense<0.000000e+00> : vector<64x96xf32>
    %10 = tpu.matmul %3, %9, %cst_9 {dimension_numbers = #tpu.dot_dimension_numbers<[1], [0], [0], [1], [0, 0, 1, 1], [], []>} : vector<64x32xbf16>, vector<32x96xbf16>, vector<64x96xf32> -> vector<64x96xf32>
    %c0_10 = arith.constant 0 : index
    %c0_11 = arith.constant 0 : index
    %11 = vector.load %arg6[%c0_10, %c0_11] : memref<1x96xf32, #tpu.memory_space<vmem>>, vector<1x96xf32>
    %12 = vector.broadcast %11 : vector<1x96xf32> to vector<64x96xf32>
    %13 = arith.addf %10, %12 : vector<64x96xf32>
    %14 = vector.extract_strided_slice %8 {offsets = [0, 0], sizes = [64, 128], strides = [1, 1]} : vector<64x192xf32> to vector<64x128xf32>
    %cst_12 = arith.constant 0.000000e+00 : f32
    %15 = vector.broadcast %cst_12 : f32 to vector<64x128xf32>
    %16 = arith.maximumf %14, %15 : vector<64x128xf32>
    %17 = arith.truncf %16 : vector<64x128xf32> to vector<64x128xbf16>
    %c0_13 = arith.constant 0 : index
    %c0_14 = arith.constant 0 : index
    %18 = vector.load %arg7[%c0_13, %c0_14] : memref<128x8xbf16, #tpu.memory_space<vmem>>, vector<128x8xbf16>
    %cst_15 = arith.constant dense<0.000000e+00> : vector<64x8xf32>
    %19 = tpu.matmul %17, %18, %cst_15 {dimension_numbers = #tpu.dot_dimension_numbers<[1], [0], [0], [1], [0, 0, 1, 1], [], []>} : vector<64x128xbf16>, vector<128x8xbf16>, vector<64x8xf32> -> vector<64x8xf32>
    %c0_16 = arith.constant 0 : index
    %c0_17 = arith.constant 0 : index
    %20 = vector.load %arg8[%c0_16, %c0_17] : memref<1x8xf32, #tpu.memory_space<vmem>>, vector<1x8xf32>
    %21 = vector.broadcast %20 : vector<1x8xf32> to vector<64x8xf32>
    %22 = arith.addf %19, %21 : vector<64x8xf32>
    %23 = vector.extract_strided_slice %13 {offsets = [0, 0], sizes = [64, 32], strides = [1, 1]} : vector<64x96xf32> to vector<64x32xf32>
    %cst_18 = arith.constant 0.000000e+00 : f32
    %24 = vector.broadcast %cst_18 : f32 to vector<64x32xf32>
    %25 = arith.maximumf %23, %24 : vector<64x32xf32>
    %26 = arith.truncf %25 : vector<64x32xf32> to vector<64x32xbf16>
    %c0_19 = arith.constant 0 : index
    %c0_20 = arith.constant 0 : index
    %27 = vector.load %arg9[%c0_19, %c0_20] : memref<32x8xbf16, #tpu.memory_space<vmem>>, vector<32x8xbf16>
    %cst_21 = arith.constant dense<0.000000e+00> : vector<64x8xf32>
    %28 = tpu.matmul %26, %27, %cst_21 {dimension_numbers = #tpu.dot_dimension_numbers<[1], [0], [0], [1], [0, 0, 1, 1], [], []>} : vector<64x32xbf16>, vector<32x8xbf16>, vector<64x8xf32> -> vector<64x8xf32>
    %c0_22 = arith.constant 0 : index
    %c0_23 = arith.constant 0 : index
    %29 = vector.load %arg10[%c0_22, %c0_23] : memref<1x8xf32, #tpu.memory_space<vmem>>, vector<1x8xf32>
    %30 = vector.broadcast %29 : vector<1x8xf32> to vector<64x8xf32>
    %31 = arith.addf %28, %30 : vector<64x8xf32>
    %cst_24 = arith.constant dense<0xFF800000> : vector<64xf32>
    %32 = vector.multi_reduction <maximumf>, %22, %cst_24 [1] : vector<64x8xf32> to vector<64xf32>
    %33 = vector.shape_cast %32 : vector<64xf32> to vector<64x1xf32>
    %34 = vector.broadcast %33 : vector<64x1xf32> to vector<64x8xf32>
    %35 = arith.subf %22, %34 : vector<64x8xf32>
    %36 = math.exp %35 : vector<64x8xf32>
    %cst_25 = arith.constant dense<0.000000e+00> : vector<64xf32>
    %37 = vector.multi_reduction <add>, %36, %cst_25 [1] : vector<64x8xf32> to vector<64xf32>
    %38 = vector.shape_cast %37 : vector<64xf32> to vector<64x1xf32>
    %39 = math.log %38 : vector<64x1xf32>
    %40 = vector.broadcast %39 : vector<64x1xf32> to vector<64x8xf32>
    %41 = arith.subf %35, %40 : vector<64x8xf32>
    %42 = tpu.reciprocal %38 {approx = true} : vector<64x1xf32> -> vector<64x1xf32>
    %43 = vector.broadcast %42 : vector<64x1xf32> to vector<64x8xf32>
    %44 = arith.mulf %36, %43 : vector<64x8xf32>
    %45 = arith.mulf %44, %41 : vector<64x8xf32>
    %cst_26 = arith.constant dense<0.000000e+00> : vector<64xf32>
    %46 = vector.multi_reduction <add>, %45, %cst_26 [1] : vector<64x8xf32> to vector<64xf32>
    %47 = vector.shape_cast %46 : vector<64xf32> to vector<64x1xf32>
    %cst_27 = arith.constant 0.000000e+00 : f32
    %48 = vector.broadcast %cst_27 : f32 to vector<64x1xf32>
    %49 = arith.subf %48, %47 : vector<64x1xf32>
    %cst_28 = arith.constant 0.000000e+00 : f32
    %50 = vector.broadcast %cst_28 : f32 to vector<64x1xf32>
    %51 = arith.subf %50, %49 : vector<64x1xf32>
    %52 = math.exp %51 : vector<64x1xf32>
    %cst_29 = arith.constant dense<0xFF800000> : vector<64xf32>
    %53 = vector.multi_reduction <maximumf>, %31, %cst_29 [1] : vector<64x8xf32> to vector<64xf32>
    %54 = vector.shape_cast %53 : vector<64xf32> to vector<64x1xf32>
    %55 = vector.broadcast %54 : vector<64x1xf32> to vector<64x8xf32>
    %56 = arith.subf %31, %55 : vector<64x8xf32>
    %57 = math.exp %56 : vector<64x8xf32>
    %cst_30 = arith.constant dense<0.000000e+00> : vector<64xf32>
    %58 = vector.multi_reduction <add>, %57, %cst_30 [1] : vector<64x8xf32> to vector<64xf32>
    %59 = vector.shape_cast %58 : vector<64xf32> to vector<64x1xf32>
    %60 = math.log %59 : vector<64x1xf32>
    %61 = vector.broadcast %60 : vector<64x1xf32> to vector<64x8xf32>
    %62 = arith.subf %56, %61 : vector<64x8xf32>
    %63 = tpu.reciprocal %59 {approx = true} : vector<64x1xf32> -> vector<64x1xf32>
    %64 = vector.broadcast %63 : vector<64x1xf32> to vector<64x8xf32>
    %65 = arith.mulf %57, %64 : vector<64x8xf32>
    %66 = arith.mulf %65, %62 : vector<64x8xf32>
    %cst_31 = arith.constant dense<0.000000e+00> : vector<64xf32>
    %67 = vector.multi_reduction <add>, %66, %cst_31 [1] : vector<64x8xf32> to vector<64xf32>
    %68 = vector.shape_cast %67 : vector<64xf32> to vector<64x1xf32>
    %cst_32 = arith.constant 0.000000e+00 : f32
    %69 = vector.broadcast %cst_32 : f32 to vector<64x1xf32>
    %70 = arith.subf %69, %68 : vector<64x1xf32>
    %cst_33 = arith.constant 0.000000e+00 : f32
    %71 = vector.broadcast %cst_33 : f32 to vector<64x1xf32>
    %72 = arith.subf %71, %70 : vector<64x1xf32>
    %73 = math.exp %72 : vector<64x1xf32>
    %74 = arith.addf %73, %52 : vector<64x1xf32>
    %75 = tpu.reciprocal %74 {approx = true} : vector<64x1xf32> -> vector<64x1xf32>
    %76 = arith.mulf %73, %75 : vector<64x1xf32>
    %77 = arith.mulf %52, %75 : vector<64x1xf32>
    %78 = vector.extract_strided_slice %8 {offsets = [0, 128], sizes = [64, 32], strides = [1, 1]} : vector<64x192xf32> to vector<64x32xf32>
    %79 = vector.extract_strided_slice %13 {offsets = [0, 32], sizes = [64, 32], strides = [1, 1]} : vector<64x96xf32> to vector<64x32xf32>
    %80 = arith.addf %78, %79 : vector<64x32xf32>
    %81 = vector.extract_strided_slice %8 {offsets = [0, 160], sizes = [64, 32], strides = [1, 1]} : vector<64x192xf32> to vector<64x32xf32>
    %82 = vector.extract_strided_slice %13 {offsets = [0, 64], sizes = [64, 32], strides = [1, 1]} : vector<64x96xf32> to vector<64x32xf32>
    %83 = arith.addf %81, %82 : vector<64x32xf32>
    %84 = arith.truncf %80 : vector<64x32xf32> to vector<64x32xbf16>
    %c0_34 = arith.constant 0 : index
    %c0_35 = arith.constant 0 : index
    %85 = vector.load %arg11[%c0_34, %c0_35] : memref<32x32xbf16, #tpu.memory_space<vmem>>, vector<32x32xbf16>
    %cst_36 = arith.constant dense<0.000000e+00> : vector<64x32xf32>
    %86 = tpu.matmul %84, %85, %cst_36 {dimension_numbers = #tpu.dot_dimension_numbers<[1], [0], [0], [1], [0, 0, 1, 1], [], []>} : vector<64x32xbf16>, vector<32x32xbf16>, vector<64x32xf32> -> vector<64x32xf32>
    %c0_37 = arith.constant 0 : index
    %c0_38 = arith.constant 0 : index
    %87 = vector.load %arg12[%c0_37, %c0_38] : memref<1x32xf32, #tpu.memory_space<vmem>>, vector<1x32xf32>
    %88 = vector.broadcast %87 : vector<1x32xf32> to vector<64x32xf32>
    %89 = arith.addf %86, %88 : vector<64x32xf32>
    %cst_39 = arith.constant 0.000000e+00 : f32
    %90 = vector.broadcast %cst_39 : f32 to vector<64x32xf32>
    %91 = arith.subf %90, %89 : vector<64x32xf32>
    %92 = math.exp %91 : vector<64x32xf32>
    %cst_40 = arith.constant 1.000000e+00 : f32
    %93 = vector.broadcast %cst_40 : f32 to vector<64x32xf32>
    %94 = arith.addf %93, %92 : vector<64x32xf32>
    %95 = tpu.reciprocal %94 {approx = true} : vector<64x32xf32> -> vector<64x32xf32>
    %96 = arith.mulf %80, %95 : vector<64x32xf32>
    %cst_41 = arith.constant 0.000000e+00 : f32
    %97 = vector.broadcast %cst_41 : f32 to vector<64x32xf32>
    %98 = arith.maximumf %96, %97 : vector<64x32xf32>
    %99 = arith.addf %98, %83 : vector<64x32xf32>
    %100 = arith.truncf %99 : vector<64x32xf32> to vector<64x32xbf16>
    %c0_42 = arith.constant 0 : index
    %c0_43 = arith.constant 0 : index
    %101 = vector.load %arg13[%c0_42, %c0_43] : memref<32x128xbf16, #tpu.memory_space<vmem>>, vector<32x128xbf16>
    %cst_44 = arith.constant dense<0.000000e+00> : vector<64x128xf32>
    %102 = tpu.matmul %100, %101, %cst_44 {dimension_numbers = #tpu.dot_dimension_numbers<[1], [0], [0], [1], [0, 0, 1, 1], [], []>} : vector<64x32xbf16>, vector<32x128xbf16>, vector<64x128xf32> -> vector<64x128xf32>
    %c0_45 = arith.constant 0 : index
    %c0_46 = arith.constant 0 : index
    %103 = vector.load %arg14[%c0_45, %c0_46] : memref<1x128xf32, #tpu.memory_space<vmem>>, vector<1x128xf32>
    %104 = vector.broadcast %103 : vector<1x128xf32> to vector<64x128xf32>
    %105 = arith.addf %102, %104 : vector<64x128xf32>
    %cst_47 = arith.constant 0.000000e+00 : f32
    %106 = vector.broadcast %cst_47 : f32 to vector<64x128xf32>
    %107 = arith.maximumf %105, %106 : vector<64x128xf32>
    %108 = arith.truncf %107 : vector<64x128xf32> to vector<64x128xbf16>
    %c0_48 = arith.constant 0 : index
    %c0_49 = arith.constant 0 : index
    %109 = vector.load %arg15[%c0_48, %c0_49] : memref<128x8xbf16, #tpu.memory_space<vmem>>, vector<128x8xbf16>
    %cst_50 = arith.constant dense<0.000000e+00> : vector<64x8xf32>
    %110 = tpu.matmul %108, %109, %cst_50 {dimension_numbers = #tpu.dot_dimension_numbers<[1], [0], [0], [1], [0, 0, 1, 1], [], []>} : vector<64x128xbf16>, vector<128x8xbf16>, vector<64x8xf32> -> vector<64x8xf32>
    %c0_51 = arith.constant 0 : index
    %c0_52 = arith.constant 0 : index
    %111 = vector.load %arg16[%c0_51, %c0_52] : memref<1x8xf32, #tpu.memory_space<vmem>>, vector<1x8xf32>
    %112 = vector.broadcast %111 : vector<1x8xf32> to vector<64x8xf32>
    %113 = arith.addf %110, %112 : vector<64x8xf32>
    %114 = vector.broadcast %76 : vector<64x1xf32> to vector<64x8xf32>
    %115 = arith.mulf %114, %31 : vector<64x8xf32>
    %116 = vector.broadcast %77 : vector<64x1xf32> to vector<64x8xf32>
    %117 = arith.mulf %116, %22 : vector<64x8xf32>
    %118 = arith.addf %115, %117 : vector<64x8xf32>
    %119 = tpu.concatenate %22, %113, %118 in 1 : vector<64x8xf32>, vector<64x8xf32>, vector<64x8xf32> -> vector<64x24xf32>
    %c0_53 = arith.constant 0 : index
    %c0_54 = arith.constant 0 : index
    %120 = vector.load %arg17[%c0_53, %c0_54] : memref<64x24xf32, #tpu.memory_space<vmem>>, vector<64x24xf32>
    tpu.vector_store %arg17[%c0_53, %c0_54], %119 {strides = array<i32>} : memref<64x24xf32, #tpu.memory_space<vmem>>, vector<64x24xf32>,
    return
  }
  func.func @transform_0(%arg0: i32) -> (i32, i32) {
    %c0_i32 = arith.constant 0 : i32
    %c0_i32_0 = arith.constant 0 : i32
    return %arg0, %c0_i32 : i32, i32
  }
  func.func @transform_1(%arg0: i32) -> (i32, i32) {
    %c0_i32 = arith.constant 0 : i32
    %c0_i32_0 = arith.constant 0 : i32
    return %arg0, %c0_i32 : i32, i32
  }
  func.func @transform_2(%arg0: i32) -> (i32, i32) {
    %c0_i32 = arith.constant 0 : i32
    %c0_i32_0 = arith.constant 0 : i32
    %c0_i32_1 = arith.constant 0 : i32
    return %c0_i32, %c0_i32_0 : i32, i32
  }
  func.func @transform_3(%arg0: i32) -> (i32, i32) {
    %c0_i32 = arith.constant 0 : i32
    %c0_i32_0 = arith.constant 0 : i32
    %c0_i32_1 = arith.constant 0 : i32
    return %c0_i32, %c0_i32_0 : i32, i32
  }
  func.func @transform_4(%arg0: i32) -> (i32, i32) {
    %c0_i32 = arith.constant 0 : i32
    %c0_i32_0 = arith.constant 0 : i32
    %c0_i32_1 = arith.constant 0 : i32
    return %c0_i32, %c0_i32_0 : i32, i32
  }
  func.func @transform_5(%arg0: i32) -> (i32, i32) {
    %c0_i32 = arith.constant 0 : i32
    %c0_i32_0 = arith.constant 0 : i32
    %c0_i32_1 = arith.constant 0 : i32
    return %c0_i32, %c0_i32_0 : i32, i32
  }
  func.func @transform_6(%arg0: i32) -> (i32, i32) {
    %c0_i32 = arith.constant 0 : i32
    %c0_i32_0 = arith.constant 0 : i32
    %c0_i32_1 = arith.constant 0 : i32
    return %c0_i32, %c0_i32_0 : i32, i32
  }
  func.func @transform_7(%arg0: i32) -> (i32, i32) {
    %c0_i32 = arith.constant 0 : i32
    %c0_i32_0 = arith.constant 0 : i32
    %c0_i32_1 = arith.constant 0 : i32
    return %c0_i32, %c0_i32_0 : i32, i32
  }
  func.func @transform_8(%arg0: i32) -> (i32, i32) {
    %c0_i32 = arith.constant 0 : i32
    %c0_i32_0 = arith.constant 0 : i32
    %c0_i32_1 = arith.constant 0 : i32
    return %c0_i32, %c0_i32_0 : i32, i32
  }
  func.func @transform_9(%arg0: i32) -> (i32, i32) {
    %c0_i32 = arith.constant 0 : i32
    %c0_i32_0 = arith.constant 0 : i32
    %c0_i32_1 = arith.constant 0 : i32
    return %c0_i32, %c0_i32_0 : i32, i32
  }
  func.func @transform_10(%arg0: i32) -> (i32, i32) {
    %c0_i32 = arith.constant 0 : i32
    %c0_i32_0 = arith.constant 0 : i32
    %c0_i32_1 = arith.constant 0 : i32
    return %c0_i32, %c0_i32_0 : i32, i32
  }
  func.func @transform_11(%arg0: i32) -> (i32, i32) {
    %c0_i32 = arith.constant 0 : i32
    %c0_i32_0 = arith.constant 0 : i32
    %c0_i32_1 = arith.constant 0 : i32
    return %c0_i32, %c0_i32_0 : i32, i32
  }
  func.func @transform_12(%arg0: i32) -> (i32, i32) {
    %c0_i32 = arith.constant 0 : i32
    %c0_i32_0 = arith.constant 0 : i32
    %c0_i32_1 = arith.constant 0 : i32
    return %c0_i32, %c0_i32_0 : i32, i32
  }
  func.func @transform_13(%arg0: i32) -> (i32, i32) {
    %c0_i32 = arith.constant 0 : i32
    %c0_i32_0 = arith.constant 0 : i32
    %c0_i32_1 = arith.constant 0 : i32
    return %c0_i32, %c0_i32_0 : i32, i32
  }
  func.func @transform_14(%arg0: i32) -> (i32, i32) {
    %c0_i32 = arith.constant 0 : i32
    %c0_i32_0 = arith.constant 0 : i32
    %c0_i32_1 = arith.constant 0 : i32
    return %c0_i32, %c0_i32_0 : i32, i32
  }
  func.func @transform_15(%arg0: i32) -> (i32, i32) {
    %c0_i32 = arith.constant 0 : i32
    %c0_i32_0 = arith.constant 0 : i32
    %c0_i32_1 = arith.constant 0 : i32
    return %c0_i32, %c0_i32_0 : i32, i32
  }
  func.func @transform_16(%arg0: i32) -> (i32, i32) {
    %c0_i32 = arith.constant 0 : i32
    %c0_i32_0 = arith.constant 0 : i32
    return %arg0, %c0_i32 : i32, i32
  }
}

</mosaic_0001>

<llo_original>
// kernel: tpu_custom_call.1
$region0: #{tpu_custom_call.1}
  #allocation0 [shape = 'u32[]', space=smem, size = 0x4, offset = 0x4, fixed_abs, tag = 'smem constant byte address 0x4 - core index']
  #allocation1 [shape = 'u32[144,128]{1,0:T(1,128)}', space=vmem, size = 0x12000, scoped, tag = 'internal scratch']
  %s0 = inlined_call_operand.vmem [shape: f32[64,32], index: 0, kind: input, shape index: {}]
  %s1 = inlined_call_operand.vmem [shape: f32[64,32], index: 1, kind: input, shape index: {}]
  %s2 = inlined_call_operand.vmem [shape: bf16[32,192], index: 2, kind: input, shape index: {}]
  %s3 = inlined_call_operand.vmem [shape: f32[1,192], index: 3, kind: input, shape index: {}]
  %s4 = inlined_call_operand.vmem [shape: bf16[32,96], index: 4, kind: input, shape index: {}]
  %s5 = inlined_call_operand.vmem [shape: f32[1,96], index: 5, kind: input, shape index: {}]
  %s6 = inlined_call_operand.vmem [shape: bf16[128,8], index: 6, kind: input, shape index: {}]
  %s7 = inlined_call_operand.vmem [shape: f32[1,8], index: 7, kind: input, shape index: {}]
  %s8 = inlined_call_operand.vmem [shape: bf16[32,8], index: 8, kind: input, shape index: {}]
  %s9 = inlined_call_operand.vmem [shape: f32[1,8], index: 9, kind: input, shape index: {}]
  %s10 = inlined_call_operand.vmem [shape: bf16[32,32], index: 10, kind: input, shape index: {}]
  %s11 = inlined_call_operand.vmem [shape: f32[1,32], index: 11, kind: input, shape index: {}]
  %s12 = inlined_call_operand.vmem [shape: bf16[32,128], index: 12, kind: input, shape index: {}]
  %s13 = inlined_call_operand.vmem [shape: f32[1,128], index: 13, kind: input, shape index: {}]
  %s14 = inlined_call_operand.vmem [shape: bf16[128,8], index: 14, kind: input, shape index: {}]
  %s15 = inlined_call_operand.vmem [shape: f32[1,8], index: 15, kind: input, shape index: {}]
  %s16 = inlined_call_operand.vmem [shape: f32[64,24], index: 16, kind: output, shape index: {}]
  %s17 = sld [smem:[#allocation0]]
  $region74: #{tpu_custom_call.1} parent=0
    _
  %s19 = ssub.s32 1, %s17
  %s20 = scalar_select 0, %s19, %s17
  // Predicated region
  $region2: #{tpu_custom_call.1} parent=0 // pred_check
    _
  $region3: #{tpu_custom_call.1} parent=0 // pred_check_branch
    %22 = sbr.rel (0) target = $region5
  $region4: #{tpu_custom_call.1} parent=0 // pred_region
    _
  $region5: #{tpu_custom_call.1} parent=0 // pred_fallthru
    _
  // Predicated region
  $region6: #{tpu_custom_call.1} parent=0 // pred_check
    _
  $region7: #{tpu_custom_call.1} parent=0 // pred_check_branch
    %24 = sbr.rel (0) target = $region9
  $region8: #{tpu_custom_call.1} parent=0 // pred_region
    _
  $region9: #{tpu_custom_call.1} parent=0 // pred_fallthru
    _
  // Predicated region
  $region10: #{tpu_custom_call.1} parent=0 // pred_check
    _
  $region11: #{tpu_custom_call.1} parent=0 // pred_check_branch
    %26 = sbr.rel (0) target = $region13
  $region12: #{tpu_custom_call.1} parent=0 // pred_region
    _
  $region13: #{tpu_custom_call.1} parent=0 // pred_fallthru
    _
  // Predicated region
  $region14: #{tpu_custom_call.1} parent=0 // pred_check
    _
  $region15: #{tpu_custom_call.1} parent=0 // pred_check_branch
    %28 = sbr.rel (0) target = $region17
  $region16: #{tpu_custom_call.1} parent=0 // pred_region
    _
  $region17: #{tpu_custom_call.1} parent=0 // pred_fallthru
    _
  // Predicated region
  $region18: #{tpu_custom_call.1} parent=0 // pred_check
    _
  $region19: #{tpu_custom_call.1} parent=0 // pred_check_branch
    %30 = sbr.rel (0) target = $region21
  $region20: #{tpu_custom_call.1} parent=0 // pred_region
    _
  $region21: #{tpu_custom_call.1} parent=0 // pred_fallthru
    _
  // Predicated region
  $region22: #{tpu_custom_call.1} parent=0 // pred_check
    _
  $region23: #{tpu_custom_call.1} parent=0 // pred_check_branch
    %32 = sbr.rel (0) target = $region25
  $region24: #{tpu_custom_call.1} parent=0 // pred_region
    _
  $region25: #{tpu_custom_call.1} parent=0 // pred_fallthru
    _
  // Predicated region
  $region26: #{tpu_custom_call.1} parent=0 // pred_check
    _
  $region27: #{tpu_custom_call.1} parent=0 // pred_check_branch
    %34 = sbr.rel (0) target = $region29
  $region28: #{tpu_custom_call.1} parent=0 // pred_region
    _
  $region29: #{tpu_custom_call.1} parent=0 // pred_fallthru
    _
  // Predicated region
  $region30: #{tpu_custom_call.1} parent=0 // pred_check
    _
  $region31: #{tpu_custom_call.1} parent=0 // pred_check_branch
    %36 = sbr.rel (0) target = $region33
  $region32: #{tpu_custom_call.1} parent=0 // pred_region
    _
  $region33: #{tpu_custom_call.1} parent=0 // pred_fallthru
    _
  // Predicated region
  $region34: #{tpu_custom_call.1} parent=0 // pred_check
    _
  $region35: #{tpu_custom_call.1} parent=0 // pred_check_branch
    %38 = sbr.rel (0) target = $region37
  $region36: #{tpu_custom_call.1} parent=0 // pred_region
    _
  $region37: #{tpu_custom_call.1} parent=0 // pred_fallthru
    _
  // Predicated region
  $region38: #{tpu_custom_call.1} parent=0 // pred_check
    _
  $region39: #{tpu_custom_call.1} parent=0 // pred_check_branch
    %40 = sbr.rel (0) target = $region41
  $region40: #{tpu_custom_call.1} parent=0 // pred_region
    _
  $region41: #{tpu_custom_call.1} parent=0 // pred_fallthru
    _
  // Predicated region
  $region42: #{tpu_custom_call.1} parent=0 // pred_check
    _
  $region43: #{tpu_custom_call.1} parent=0 // pred_check_branch
    %42 = sbr.rel (0) target = $region45
  $region44: #{tpu_custom_call.1} parent=0 // pred_region
    _
  $region45: #{tpu_custom_call.1} parent=0 // pred_fallthru
    _
  // Predicated region
  $region46: #{tpu_custom_call.1} parent=0 // pred_check
    _
  $region47: #{tpu_custom_call.1} parent=0 // pred_check_branch
    %44 = sbr.rel (0) target = $region49
  $region48: #{tpu_custom_call.1} parent=0 // pred_region
    _
  $region49: #{tpu_custom_call.1} parent=0 // pred_fallthru
    _
  // Predicated region
  $region50: #{tpu_custom_call.1} parent=0 // pred_check
    _
  $region51: #{tpu_custom_call.1} parent=0 // pred_check_branch
    %46 = sbr.rel (0) target = $region53
  $region52: #{tpu_custom_call.1} parent=0 // pred_region
    _
  $region53: #{tpu_custom_call.1} parent=0 // pred_fallthru
    _
  // Predicated region
  $region54: #{tpu_custom_call.1} parent=0 // pred_check
    _
  $region55: #{tpu_custom_call.1} parent=0 // pred_check_branch
    %48 = sbr.rel (0) target = $region57
  $region56: #{tpu_custom_call.1} parent=0 // pred_region
    _
  $region57: #{tpu_custom_call.1} parent=0 // pred_fallthru
    _
  // Predicated region
  $region58: #{tpu_custom_call.1} parent=0 // pred_check
    _
  $region59: #{tpu_custom_call.1} parent=0 // pred_check_branch
    %50 = sbr.rel (0) target = $region61
  $region60: #{tpu_custom_call.1} parent=0 // pred_region
    _
  $region61: #{tpu_custom_call.1} parent=0 // pred_fallthru
    _
  // Predicated region
  $region62: #{tpu_custom_call.1} parent=0 // pred_check
    _
  $region63: #{tpu_custom_call.1} parent=0 // pred_check_branch
    %52 = sbr.rel (0) target = $region65
  $region64: #{tpu_custom_call.1} parent=0 // pred_region
    _
  $region65: #{tpu_custom_call.1} parent=0 // pred_fallthru
    _
  %v54 = vld [vmem:[%s0] sm:$0xff]
  %v55 = vld [vmem:[%s0 + $0x8] sm:$0xff]
  %v56 = vld [vmem:[%s0 + $0x10] sm:$0xff]
  %v57 = vld [vmem:[%s0 + $0x18] sm:$0xff]
  %v58 = vld [vmem:[%s0 + $0x20] sm:$0xff]
  %v59 = vld [vmem:[%s0 + $0x28] sm:$0xff]
  %v60 = vld [vmem:[%s0 + $0x30] sm:$0xff]
  %v61 = vld [vmem:[%s0 + $0x38] sm:$0xff]
  %v62 = vpack.c.bf16 %v55, %v54
  %v63 = vpack.c.bf16 %v57, %v56
  %v64 = vpack.c.bf16 %v59, %v58
  %v65 = vpack.c.bf16 %v61, %v60
  %v66 = vld [vmem:[%s1] sm:$0xff]
  %v67 = vld [vmem:[%s1 + $0x8] sm:$0xff]
  %v68 = vld [vmem:[%s1 + $0x10] sm:$0xff]
  %v69 = vld [vmem:[%s1 + $0x18] sm:$0xff]
  %v70 = vld [vmem:[%s1 + $0x20] sm:$0xff]
  %v71 = vld [vmem:[%s1 + $0x28] sm:$0xff]
  %v72 = vld [vmem:[%s1 + $0x30] sm:$0xff]
  %v73 = vld [vmem:[%s1 + $0x38] sm:$0xff]
  %v74 = vpack.c.bf16 %v67, %v66
  %v75 = vpack.c.bf16 %v69, %v68
  %v76 = vpack.c.bf16 %v71, %v70
  %v77 = vpack.c.bf16 %v73, %v72
  %v78 = vld [vmem:[%s2] sm:$0xff]
  %v79 = vld [vmem:[%s2 + $0x8] sm:$0xff]
  %v80 = vld [vmem:[%s2 + $0x10] sm:$0xff]
  %v81 = vld [vmem:[%s2 + $0x18] sm:$0xff]
  %v82 = vld [vmem:[%s3] sm:$0x3]
  %v84 = vlaneseq
  %v85 = vshrl.u32 %v84, 7
  %v86 = vsub.s32 0, %v85
  %v87 = vrot.slane %v82, %v86
  %v88 = vlaneseq
  %v89 = vshrl.u32 %v88, 7
  %v90 = vsub.s32 1, %v89
  %v91 = vrot.slane %v82, %v90
  %v98 = vunpack.c.l.b16 %v78
  %v99 = vunpack.c.h.b16 %v78
  %v100 = vunpack.c.l.b16 %v79
  %v101 = vunpack.c.h.b16 %v79
  %v102 = vunpack.c.l.b16 %v80
  %v103 = vunpack.c.h.b16 %v80
  %v104 = vunpack.c.l.b16 %v81
  %v105 = vunpack.c.h.b16 %v81
  %v106 = vpack.c.b16 %v100, %v98
  %v107 = vpack.c.b16 %v101, %v99
  %v108 = vpack.c.b16 %v104, %v102
  %v109 = vpack.c.b16 %v105, %v103
  %vm114 = vcmask 261120
  %v116 = vsel %vm114, %v62, 0
  %v119 = vsel %vm114, %v63, 0
  %v122 = vsel %vm114, %v64, 0
  %v125 = vsel %vm114, %v65, 0
  %127 = vmatprep.subr.bf16.mxu0 %v107
  %128 = vmatpush1.bf16.msra.mxu0 %v106
  %129 = vmatprep.subr.bf16.mxu0 %v109
  %130 = vmatpush1.bf16.msra.mxu0 %v108
  %131 = vmatprep.subr.bf16.mxu0 0
  %132 = vmatpush1.bf16.msra.mxu0 0
  %133 = vmatprep.subr.bf16.mxu0 0
  %134 = vmatpush1.bf16.msra.mxu0 0
  %135 = vmatprep.subr.bf16.mxu0 0
  %136 = vmatpush1.bf16.msra.mxu0 0
  %137 = vmatprep.subr.bf16.mxu0 0
  %138 = vmatpush1.bf16.msra.mxu0 0
  %139 = vmatprep.subr.bf16.mxu0 0
  %140 = vmatpush1.bf16.msra.mxu0 0
  %141 = vmatprep.subr.bf16.mxu0 0
  %142 = vmatpush1.bf16.msra.mxu0 0
  %143 = vmatprep.subr.bf16.mxu0 0
  %144 = vmatpush1.bf16.msra.mxu0 0
  %145 = vmatprep.subr.bf16.mxu0 0
  %146 = vmatpush1.bf16.msra.mxu0 0
  %147 = vmatprep.subr.bf16.mxu0 0
  %148 = vmatpush1.bf16.msra.mxu0 0
  %149 = vmatprep.subr.bf16.mxu0 0
  %150 = vmatpush1.bf16.msra.mxu0 0
  %151 = vmatprep.subr.bf16.mxu0 0
  %152 = vmatpush1.bf16.msra.mxu0 0
  %153 = vmatprep.subr.bf16.mxu0 0
  %154 = vmatpush1.bf16.msra.mxu0 0
  %155 = vmatprep.subr.bf16.mxu0 0
  %156 = vmatpush1.bf16.msra.mxu0 0
  %157 = vmatprep.subr.bf16.mxu0 0
  %158 = vmatpush1.bf16.msra.mxu0 0
  %159 = vmatprep.mubr.bf16.mxu0 0
  %160 = vmatmul.mubr.bf16.gmra.mrb[0].mxu0 %v116
  %v161 = vpop.f32.mrb[0].mxu0
  %v162 = vadd.f32 %v87, %v161
  %v163 = vpop.f32.mrb[0].mxu0
  %v164 = vadd.f32 %v91, %v163
  %v165 = vpop.f32.mrb[0].mxu0
  %v166 = vadd.f32 %v87, %v165
  %v167 = vpop.f32.mrb[0].mxu0
  %v168 = vadd.f32 %v91, %v167
  %169 = vmatprep.mubr.bf16.mxu0 0
  %170 = vmatmul.mubr.bf16.gmra.mrb[0].mxu0 %v119
  %v171 = vpop.f32.mrb[0].mxu0
  %v172 = vadd.f32 %v87, %v171
  %v173 = vpop.f32.mrb[0].mxu0
  %v174 = vadd.f32 %v91, %v173
  %v175 = vpop.f32.mrb[0].mxu0
  %v176 = vadd.f32 %v87, %v175
  %v177 = vpop.f32.mrb[0].mxu0
  %v178 = vadd.f32 %v91, %v177
  %179 = vmatprep.mubr.bf16.mxu0 0
  %180 = vmatmul.mubr.bf16.gmra.mrb[0].mxu0 %v122
  %v181 = vpop.f32.mrb[0].mxu0
  %v182 = vadd.f32 %v87, %v181
  %v183 = vpop.f32.mrb[0].mxu0
  %v184 = vadd.f32 %v91, %v183
  %v185 = vpop.f32.mrb[0].mxu0
  %v186 = vadd.f32 %v87, %v185
  %v187 = vpop.f32.mrb[0].mxu0
  %v188 = vadd.f32 %v91, %v187
  %189 = vmatprep.mubr.bf16.mxu0 0
  %190 = vmatmul.mubr.bf16.gmra.mrb[0].mxu0 %v125
  %v191 = vpop.f32.mrb[0].mxu0
  %v192 = vadd.f32 %v87, %v191
  %v193 = vpop.f32.mrb[0].mxu0
  %v194 = vadd.f32 %v91, %v193
  %v195 = vpop.f32.mrb[0].mxu0
  %v196 = vadd.f32 %v87, %v195
  %v197 = vpop.f32.mrb[0].mxu0
  %v198 = vadd.f32 %v91, %v197
  %199 = vdwg.mxu0
  %v200 = vld [vmem:[%s4] sm:$0xf]
  %v201 = vld [vmem:[%s4 + $0x4] sm:$0xf]
  %v202 = vld [vmem:[%s4 + $0x8] sm:$0xf]
  %v203 = vld [vmem:[%s4 + $0xc] sm:$0xf]
  %v204 = vld [vmem:[%s5] sm:$0x1]
  %v206 = vlaneseq
  %v207 = vshrl.u32 %v206, 7
  %v208 = vsub.s32 0, %v207
  %v209 = vrot.slane %v204, %v208
  %v215 = vunpack.c.l.b16 %v200
  %v216 = vunpack.c.l.b16 %v201
  %v217 = vunpack.c.l.b16 %v202
  %v218 = vunpack.c.l.b16 %v203
  %v219 = vpack.c.b16 %v216, %v215
  %v220 = vpack.c.b16 %v218, %v217
  %v224 = vsel %vm114, %v74, 0
  %v227 = vsel %vm114, %v75, 0
  %v230 = vsel %vm114, %v76, 0
  %v233 = vsel %vm114, %v77, 0
  %235 = vmatprep.subr.bf16.mxu0 0
  %236 = vmatpush1.bf16.msra.mxu0 %v219
  %237 = vmatprep.subr.bf16.mxu0 0
  %238 = vmatpush1.bf16.msra.mxu0 %v220
  %239 = vmatprep.subr.bf16.mxu0 0
  %240 = vmatpush1.bf16.msra.mxu0 0
  %241 = vmatprep.subr.bf16.mxu0 0
  %242 = vmatpush1.bf16.msra.mxu0 0
  %243 = vmatprep.subr.bf16.mxu0 0
  %244 = vmatpush1.bf16.msra.mxu0 0
  %245 = vmatprep.subr.bf16.mxu0 0
  %246 = vmatpush1.bf16.msra.mxu0 0
  %247 = vmatprep.subr.bf16.mxu0 0
  %248 = vmatpush1.bf16.msra.mxu0 0
  %249 = vmatprep.subr.bf16.mxu0 0
  %250 = vmatpush1.bf16.msra.mxu0 0
  %251 = vmatprep.subr.bf16.mxu0 0
  %252 = vmatpush1.bf16.msra.mxu0 0
  %253 = vmatprep.subr.bf16.mxu0 0
  %254 = vmatpush1.bf16.msra.mxu0 0
  %255 = vmatprep.subr.bf16.mxu0 0
  %256 = vmatpush1.bf16.msra.mxu0 0
  %257 = vmatprep.subr.bf16.mxu0 0
  %258 = vmatpush1.bf16.msra.mxu0 0
  %259 = vmatprep.subr.bf16.mxu0 0
  %260 = vmatpush1.bf16.msra.mxu0 0
  %261 = vmatprep.subr.bf16.mxu0 0
  %262 = vmatpush1.bf16.msra.mxu0 0
  %263 = vmatprep.subr.bf16.mxu0 0
  %264 = vmatpush1.bf16.msra.mxu0 0
  %265 = vmatprep.subr.bf16.mxu0 0
  %266 = vmatpush1.bf16.msra.mxu0 0
  %267 = vmatprep.mubr.bf16.mxu0 0
  %268 = vmatmul.mubr.bf16.gmra.mrb[0].mxu0 %v224
  %v269 = vpop.f32.mrb[0].mxu0
  %v270 = vadd.f32 %v209, %v269
  %v271 = vpop.f32.mrb[0].mxu0
  %v272 = vpop.f32.mrb[0].mxu0
  %v273 = vadd.f32 %v209, %v272
  %v274 = vpop.f32.mrb[0].mxu0
  %275 = vmatprep.mubr.bf16.mxu0 0
  %276 = vmatmul.mubr.bf16.gmra.mrb[0].mxu0 %v227
  %v277 = vpop.f32.mrb[0].mxu0
  %v278 = vadd.f32 %v209, %v277
  %v279 = vpop.f32.mrb[0].mxu0
  %v280 = vpop.f32.mrb[0].mxu0
  %v281 = vadd.f32 %v209, %v280
  %v282 = vpop.f32.mrb[0].mxu0
  %283 = vmatprep.mubr.bf16.mxu0 0
  %284 = vmatmul.mubr.bf16.gmra.mrb[0].mxu0 %v230
  %v285 = vpop.f32.mrb[0].mxu0
  %v286 = vadd.f32 %v209, %v285
  %v287 = vpop.f32.mrb[0].mxu0
  %v288 = vpop.f32.mrb[0].mxu0
  %v289 = vadd.f32 %v209, %v288
  %v290 = vpop.f32.mrb[0].mxu0
  %291 = vmatprep.mubr.bf16.mxu0 0
  %292 = vmatmul.mubr.bf16.gmra.mrb[0].mxu0 %v233
  %v293 = vpop.f32.mrb[0].mxu0
  %v294 = vadd.f32 %v209, %v293
  %v295 = vpop.f32.mrb[0].mxu0
  %v296 = vpop.f32.mrb[0].mxu0
  %v297 = vadd.f32 %v209, %v296
  %v298 = vpop.f32.mrb[0].mxu0
  %299 = vdwg.mxu0
  %v300 = vmax.f32 %v162, 0.0
  %v301 = vmax.f32 %v166, 0.0
  %v302 = vmax.f32 %v172, 0.0
  %v303 = vmax.f32 %v176, 0.0
  %v304 = vmax.f32 %v182, 0.0
  %v305 = vmax.f32 %v186, 0.0
  %v306 = vmax.f32 %v192, 0.0
  %v307 = vmax.f32 %v196, 0.0
  %v308 = vpack.c.bf16 %v301, %v300
  %v309 = vpack.c.bf16 %v303, %v302
  %v310 = vpack.c.bf16 %v305, %v304
  %v311 = vpack.c.bf16 %v307, %v306
  %v312 = vld [vmem:[%s6] sm:$0xf]
  %v313 = vld [vmem:[%s6 + $0x4] sm:$0xf]
  %v314 = vld [vmem:[%s6 + $0x8] sm:$0xf]
  %v315 = vld [vmem:[%s6 + $0xc] sm:$0xf]
  %v316 = vld [vmem:[%s6 + $0x10] sm:$0xf]
  %v317 = vld [vmem:[%s6 + $0x14] sm:$0xf]
  %v318 = vld [vmem:[%s6 + $0x18] sm:$0xf]
  %v319 = vld [vmem:[%s6 + $0x1c] sm:$0xf]
  %v320 = vld [vmem:[%s6 + $0x20] sm:$0xf]
  %v321 = vld [vmem:[%s6 + $0x24] sm:$0xf]
  %v322 = vld [vmem:[%s6 + $0x28] sm:$0xf]
  %v323 = vld [vmem:[%s6 + $0x2c] sm:$0xf]
  %v324 = vld [vmem:[%s6 + $0x30] sm:$0xf]
  %v325 = vld [vmem:[%s6 + $0x34] sm:$0xf]
  %v326 = vld [vmem:[%s6 + $0x38] sm:$0xf]
  %v327 = vld [vmem:[%s6 + $0x3c] sm:$0xf]
  %v328 = vld [vmem:[%s7] sm:$0x1]
  %v330 = vlaneseq
  %v331 = vshrl.u32 %v330, 7
  %v332 = vsub.s32 0, %v331
  %v333 = vrot.slane %v328, %v332
  %v351 = vunpack.c.l.b16 %v312
  %v352 = vunpack.c.l.b16 %v313
  %v353 = vunpack.c.l.b16 %v314
  %v354 = vunpack.c.l.b16 %v315
  %v355 = vunpack.c.l.b16 %v316
  %v356 = vunpack.c.l.b16 %v317
  %v357 = vunpack.c.l.b16 %v318
  %v358 = vunpack.c.l.b16 %v319
  %v359 = vunpack.c.l.b16 %v320
  %v360 = vunpack.c.l.b16 %v321
  %v361 = vunpack.c.l.b16 %v322
  %v362 = vunpack.c.l.b16 %v323
  %v363 = vunpack.c.l.b16 %v324
  %v364 = vunpack.c.l.b16 %v325
  %v365 = vunpack.c.l.b16 %v326
  %v366 = vunpack.c.l.b16 %v327
  %v367 = vpack.c.b16 %v352, %v351
  %v368 = vpack.c.b16 %v354, %v353
  %v369 = vpack.c.b16 %v356, %v355
  %v370 = vpack.c.b16 %v358, %v357
  %v371 = vpack.c.b16 %v360, %v359
  %v372 = vpack.c.b16 %v362, %v361
  %v373 = vpack.c.b16 %v364, %v363
  %v374 = vpack.c.b16 %v366, %v365
  %383 = vmatprep.subr.bf16.mxu0 0
  %384 = vmatpush1.bf16.msra.mxu0 %v367
  %385 = vmatprep.subr.bf16.mxu0 0
  %386 = vmatpush1.bf16.msra.mxu0 %v368
  %387 = vmatprep.subr.bf16.mxu0 0
  %388 = vmatpush1.bf16.msra.mxu0 %v369
  %389 = vmatprep.subr.bf16.mxu0 0
  %390 = vmatpush1.bf16.msra.mxu0 %v370
  %391 = vmatprep.subr.bf16.mxu0 0
  %392 = vmatpush1.bf16.msra.mxu0 %v371
  %393 = vmatprep.subr.bf16.mxu0 0
  %394 = vmatpush1.bf16.msra.mxu0 %v372
  %395 = vmatprep.subr.bf16.mxu0 0
  %396 = vmatpush1.bf16.msra.mxu0 %v373
  %397 = vmatprep.subr.bf16.mxu0 0
  %398 = vmatpush1.bf16.msra.mxu0 %v374
  %399 = vmatprep.subr.bf16.mxu0 0
  %400 = vmatpush1.bf16.msra.mxu0 0
  %401 = vmatprep.subr.bf16.mxu0 0
  %402 = vmatpush1.bf16.msra.mxu0 0
  %403 = vmatprep.subr.bf16.mxu0 0
  %404 = vmatpush1.bf16.msra.mxu0 0
  %405 = vmatprep.subr.bf16.mxu0 0
  %406 = vmatpush1.bf16.msra.mxu0 0
  %407 = vmatprep.subr.bf16.mxu0 0
  %408 = vmatpush1.bf16.msra.mxu0 0
  %409 = vmatprep.subr.bf16.mxu0 0
  %410 = vmatpush1.bf16.msra.mxu0 0
  %411 = vmatprep.subr.bf16.mxu0 0
  %412 = vmatpush1.bf16.msra.mxu0 0
  %413 = vmatprep.subr.bf16.mxu0 0
  %414 = vmatpush1.bf16.msra.mxu0 0
  %415 = vmatprep.mubr.bf16.mxu0 0
  %416 = vmatmul.mubr.bf16.gmra.mrb[0].mxu0 %v308
  %v417 = vpop.f32.mrb[0].mxu0
  %v418 = vadd.f32 %v333, %v417
  %v419 = vpop.f32.mrb[0].mxu0
  %v420 = vpop.f32.mrb[0].mxu0
  %v421 = vadd.f32 %v333, %v420
  %v422 = vpop.f32.mrb[0].mxu0
  %423 = vmatprep.mubr.bf16.mxu0 0
  %424 = vmatmul.mubr.bf16.gmra.mrb[0].mxu0 %v309
  %v425 = vpop.f32.mrb[0].mxu0
  %v426 = vadd.f32 %v333, %v425
  %v427 = vpop.f32.mrb[0].mxu0
  %v428 = vpop.f32.mrb[0].mxu0
  %v429 = vadd.f32 %v333, %v428
  %v430 = vpop.f32.mrb[0].mxu0
  %431 = vmatprep.mubr.bf16.mxu0 0
  %432 = vmatmul.mubr.bf16.gmra.mrb[0].mxu0 %v310
  %v433 = vpop.f32.mrb[0].mxu0
  %v434 = vadd.f32 %v333, %v433
  %v435 = vpop.f32.mrb[0].mxu0
  %v436 = vpop.f32.mrb[0].mxu0
  %v437 = vadd.f32 %v333, %v436
  %v438 = vpop.f32.mrb[0].mxu0
  %439 = vmatprep.mubr.bf16.mxu0 0
  %440 = vmatmul.mubr.bf16.gmra.mrb[0].mxu0 %v311
  %v441 = vpop.f32.mrb[0].mxu0
  %v442 = vadd.f32 %v333, %v441
  %v443 = vpop.f32.mrb[0].mxu0
  %v444 = vpop.f32.mrb[0].mxu0
  %v445 = vadd.f32 %v333, %v444
  %v446 = vpop.f32.mrb[0].mxu0
  %447 = vdwg.mxu0
  %v448 = vmax.f32 %v270, 0.0
  %v449 = vmax.f32 %v273, 0.0
  %v450 = vmax.f32 %v278, 0.0
  %v451 = vmax.f32 %v281, 0.0
  %v452 = vmax.f32 %v286, 0.0
  %v453 = vmax.f32 %v289, 0.0
  %v454 = vmax.f32 %v294, 0.0
  %v455 = vmax.f32 %v297, 0.0
  %v456 = vpack.c.bf16 %v449, %v448
  %v457 = vpack.c.bf16 %v451, %v450
  %v458 = vpack.c.bf16 %v453, %v452
  %v459 = vpack.c.bf16 %v455, %v454
  %v460 = vld [vmem:[%s8] sm:$0xf]
  %v461 = vld [vmem:[%s8 + $0x4] sm:$0xf]
  %v462 = vld [vmem:[%s8 + $0x8] sm:$0xf]
  %v463 = vld [vmem:[%s8 + $0xc] sm:$0xf]
  %v464 = vld [vmem:[%s9] sm:$0x1]
  %v466 = vlaneseq
  %v467 = vshrl.u32 %v466, 7
  %v468 = vsub.s32 0, %v467
  %v469 = vrot.slane %v464, %v468
  %v475 = vunpack.c.l.b16 %v460
  %v476 = vunpack.c.l.b16 %v461
  %v477 = vunpack.c.l.b16 %v462
  %v478 = vunpack.c.l.b16 %v463
  %v479 = vpack.c.b16 %v476, %v475
  %v480 = vpack.c.b16 %v478, %v477
  %v484 = vsel %vm114, %v456, 0
  %v487 = vsel %vm114, %v457, 0
  %v490 = vsel %vm114, %v458, 0
  %v493 = vsel %vm114, %v459, 0
  %495 = vmatprep.subr.bf16.mxu0 0
  %496 = vmatpush1.bf16.msra.mxu0 %v479
  %497 = vmatprep.subr.bf16.mxu0 0
  %498 = vmatpush1.bf16.msra.mxu0 %v480
  %499 = vmatprep.subr.bf16.mxu0 0
  %500 = vmatpush1.bf16.msra.mxu0 0
  %501 = vmatprep.subr.bf16.mxu0 0
  %502 = vmatpush1.bf16.msra.mxu0 0
  %503 = vmatprep.subr.bf16.mxu0 0
  %504 = vmatpush1.bf16.msra.mxu0 0
  %505 = vmatprep.subr.bf16.mxu0 0
  %506 = vmatpush1.bf16.msra.mxu0 0
  %507 = vmatprep.subr.bf16.mxu0 0
  %508 = vmatpush1.bf16.msra.mxu0 0
  %509 = vmatprep.subr.bf16.mxu0 0
  %510 = vmatpush1.bf16.msra.mxu0 0
  %511 = vmatprep.subr.bf16.mxu0 0
  %512 = vmatpush1.bf16.msra.mxu0 0
  %513 = vmatprep.subr.bf16.mxu0 0
  %514 = vmatpush1.bf16.msra.mxu0 0
  %515 = vmatprep.subr.bf16.mxu0 0
  %516 = vmatpush1.bf16.msra.mxu0 0
  %517 = vmatprep.subr.bf16.mxu0 0
  %518 = vmatpush1.bf16.msra.mxu0 0
  %519 = vmatprep.subr.bf16.mxu0 0
  %520 = vmatpush1.bf16.msra.mxu0 0
  %521 = vmatprep.subr.bf16.mxu0 0
  %522 = vmatpush1.bf16.msra.mxu0 0
  %523 = vmatprep.subr.bf16.mxu0 0
  %524 = vmatpush1.bf16.msra.mxu0 0
  %525 = vmatprep.subr.bf16.mxu0 0
  %526 = vmatpush1.bf16.msra.mxu0 0
  %527 = vmatprep.mubr.bf16.mxu0 0
  %528 = vmatmul.mubr.bf16.gmra.mrb[0].mxu0 %v484
  %v529 = vpop.f32.mrb[0].mxu0
  %v530 = vadd.f32 %v469, %v529
  %v531 = vpop.f32.mrb[0].mxu0
  %v532 = vpop.f32.mrb[0].mxu0
  %v533 = vadd.f32 %v469, %v532
  %v534 = vpop.f32.mrb[0].mxu0
  %535 = vmatprep.mubr.bf16.mxu0 0
  %536 = vmatmul.mubr.bf16.gmra.mrb[0].mxu0 %v487
  %v537 = vpop.f32.mrb[0].mxu0
  %v538 = vadd.f32 %v469, %v537
  %v539 = vpop.f32.mrb[0].mxu0
  %v540 = vpop.f32.mrb[0].mxu0
  %v541 = vadd.f32 %v469, %v540
  %v542 = vpop.f32.mrb[0].mxu0
  %543 = vmatprep.mubr.bf16.mxu0 0
  %544 = vmatmul.mubr.bf16.gmra.mrb[0].mxu0 %v490
  %v545 = vpop.f32.mrb[0].mxu0
  %v546 = vadd.f32 %v469, %v545
  %v547 = vpop.f32.mrb[0].mxu0
  %v548 = vpop.f32.mrb[0].mxu0
  %v549 = vadd.f32 %v469, %v548
  %v550 = vpop.f32.mrb[0].mxu0
  %551 = vmatprep.mubr.bf16.mxu0 0
  %552 = vmatmul.mubr.bf16.gmra.mrb[0].mxu0 %v493
  %v553 = vpop.f32.mrb[0].mxu0
  %v554 = vadd.f32 %v469, %v553
  %v555 = vpop.f32.mrb[0].mxu0
  %v556 = vpop.f32.mrb[0].mxu0
  %v557 = vadd.f32 %v469, %v556
  %v558 = vpop.f32.mrb[0].mxu0
  %559 = vdwg.mxu0
  %vm560 = vcmask 64512
  %v561 = vsel %vm560, %v418, -inf
  %562 = vmax.xlane.f32.xlu0 %v561
  %v563 = vpop.xlane.xlu0 %562
  %v564 = vsel %vm560, %v421, -inf
  %565 = vmax.xlane.f32.xlu0 %v564
  %v566 = vpop.xlane.xlu0 %565
  %v567 = vsel %vm560, %v426, -inf
  %568 = vmax.xlane.f32.xlu0 %v567
  %v569 = vpop.xlane.xlu0 %568
  %v570 = vsel %vm560, %v429, -inf
  %571 = vmax.xlane.f32.xlu0 %v570
  %v572 = vpop.xlane.xlu0 %571
  %v573 = vsel %vm560, %v434, -inf
  %574 = vmax.xlane.f32.xlu0 %v573
  %v575 = vpop.xlane.xlu0 %574
  %v576 = vsel %vm560, %v437, -inf
  %577 = vmax.xlane.f32.xlu0 %v576
  %v578 = vpop.xlane.xlu0 %577
  %v579 = vsel %vm560, %v442, -inf
  %580 = vmax.xlane.f32.xlu0 %v579
  %v581 = vpop.xlane.xlu0 %580
  %v582 = vsel %vm560, %v445, -inf
  %583 = vmax.xlane.f32.xlu0 %v582
  %v584 = vpop.xlane.xlu0 %583
  %v585 = vsub.f32 %v418, %v563
  %v586 = vsub.f32 %v421, %v566
  %v587 = vsub.f32 %v426, %v569
  %v588 = vsub.f32 %v429, %v572
  %v589 = vsub.f32 %v434, %v575
  %v590 = vsub.f32 %v437, %v578
  %v591 = vsub.f32 %v442, %v581
  %v592 = vsub.f32 %v445, %v584
  %v593 = vmul.f32 %v585, 1.442695
  %v594 = vpow.pop %v593
  %v595 = vmul.f32 %v586, 1.442695
  %v596 = vpow.pop %v595
  %v597 = vmul.f32 %v587, 1.442695
  %v598 = vpow.pop %v597
  %v599 = vmul.f32 %v588, 1.442695
  %v600 = vpow.pop %v599
  %v601 = vmul.f32 %v589, 1.442695
  %v602 = vpow.pop %v601
  %v603 = vmul.f32 %v590, 1.442695
  %v604 = vpow.pop %v603
  %v605 = vmul.f32 %v591, 1.442695
  %v606 = vpow.pop %v605
  %v607 = vmul.f32 %v592, 1.442695
  %v608 = vpow.pop %v607
  %v609 = vsel %vm560, %v594, 0.0
  %610 = vadd.xlane.f32.xlu0 %v609
  %v611 = vpop.xlane.xlu0 %610
  %v612 = vsel %vm560, %v596, 0.0
  %613 = vadd.xlane.f32.xlu0 %v612
  %v614 = vpop.xlane.xlu0 %613
  %v615 = vsel %vm560, %v598, 0.0
  %616 = vadd.xlane.f32.xlu0 %v615
  %v617 = vpop.xlane.xlu0 %616
  %v618 = vsel %vm560, %v600, 0.0
  %619 = vadd.xlane.f32.xlu0 %v618
  %v620 = vpop.xlane.xlu0 %619
  %v621 = vsel %vm560, %v602, 0.0
  %622 = vadd.xlane.f32.xlu0 %v621
  %v623 = vpop.xlane.xlu0 %622
  %v624 = vsel %vm560, %v604, 0.0
  %625 = vadd.xlane.f32.xlu0 %v624
  %v626 = vpop.xlane.xlu0 %625
  %v627 = vsel %vm560, %v606, 0.0
  %628 = vadd.xlane.f32.xlu0 %v627
  %v629 = vpop.xlane.xlu0 %628
  %v630 = vsel %vm560, %v608, 0.0
  %631 = vadd.xlane.f32.xlu0 %v630
  %v632 = vpop.xlane.xlu0 %631
  %v633 = vlog2.pop %v611
  %v634 = vmul.f32 %v633, 0.6931472
  %v635 = vlog2.pop %v614
  %v636 = vmul.f32 %v635, 0.6931472
  %v637 = vlog2.pop %v617
  %v638 = vmul.f32 %v637, 0.6931472
  %v639 = vlog2.pop %v620
  %v640 = vmul.f32 %v639, 0.6931472
  %v641 = vlog2.pop %v623
  %v642 = vmul.f32 %v641, 0.6931472
  %v643 = vlog2.pop %v626
  %v644 = vmul.f32 %v643, 0.6931472
  %v645 = vlog2.pop %v629
  %v646 = vmul.f32 %v645, 0.6931472
  %v647 = vlog2.pop %v632
  %v648 = vmul.f32 %v647, 0.6931472
  %v649 = vsub.f32 %v585, %v634
  %v650 = vsub.f32 %v586, %v636
  %v651 = vsub.f32 %v587, %v638
  %v652 = vsub.f32 %v588, %v640
  %v653 = vsub.f32 %v589, %v642
  %v654 = vsub.f32 %v590, %v644
  %v655 = vsub.f32 %v591, %v646
  %v656 = vsub.f32 %v592, %v648
  %v657 = vrcp.pop %v611
  %v658 = vrcp.pop %v614
  %v659 = vrcp.pop %v617
  %v660 = vrcp.pop %v620
  %v661 = vrcp.pop %v623
  %v662 = vrcp.pop %v626
  %v663 = vrcp.pop %v629
  %v664 = vrcp.pop %v632
  %v665 = vmul.f32 %v594, %v657
  %v666 = vmul.f32 %v596, %v658
  %v667 = vmul.f32 %v598, %v659
  %v668 = vmul.f32 %v600, %v660
  %v669 = vmul.f32 %v602, %v661
  %v670 = vmul.f32 %v604, %v662
  %v671 = vmul.f32 %v606, %v663
  %v672 = vmul.f32 %v608, %v664
  %v673 = vmul.f32 %v665, %v649
  %v674 = vmul.f32 %v666, %v650
  %v675 = vmul.f32 %v667, %v651
  %v676 = vmul.f32 %v668, %v652
  %v677 = vmul.f32 %v669, %v653
  %v678 = vmul.f32 %v670, %v654
  %v679 = vmul.f32 %v671, %v655
  %v680 = vmul.f32 %v672, %v656
  %v681 = vsel %vm560, %v673, 0.0
  %682 = vadd.xlane.f32.xlu0 %v681
  %v683 = vpop.xlane.xlu0 %682
  %v684 = vsel %vm560, %v674, 0.0
  %685 = vadd.xlane.f32.xlu0 %v684
  %v686 = vpop.xlane.xlu0 %685
  %v687 = vsel %vm560, %v675, 0.0
  %688 = vadd.xlane.f32.xlu0 %v687
  %v689 = vpop.xlane.xlu0 %688
  %v690 = vsel %vm560, %v676, 0.0
  %691 = vadd.xlane.f32.xlu0 %v690
  %v692 = vpop.xlane.xlu0 %691
  %v693 = vsel %vm560, %v677, 0.0
  %694 = vadd.xlane.f32.xlu0 %v693
  %v695 = vpop.xlane.xlu0 %694
  %v696 = vsel %vm560, %v678, 0.0
  %697 = vadd.xlane.f32.xlu0 %v696
  %v698 = vpop.xlane.xlu0 %697
  %v699 = vsel %vm560, %v679, 0.0
  %700 = vadd.xlane.f32.xlu0 %v699
  %v701 = vpop.xlane.xlu0 %700
  %v702 = vsel %vm560, %v680, 0.0
  %703 = vadd.xlane.f32.xlu0 %v702
  %v704 = vpop.xlane.xlu0 %703
  %v705 = vsub.f32 0.0, %v683
  %v706 = vsub.f32 0.0, %v686
  %v707 = vsub.f32 0.0, %v689
  %v708 = vsub.f32 0.0, %v692
  %v709 = vsub.f32 0.0, %v695
  %v710 = vsub.f32 0.0, %v698
  %v711 = vsub.f32 0.0, %v701
  %v712 = vsub.f32 0.0, %v704
  %v713 = vsub.f32 0.0, %v705
  %v714 = vsub.f32 0.0, %v706
  %v715 = vsub.f32 0.0, %v707
  %v716 = vsub.f32 0.0, %v708
  %v717 = vsub.f32 0.0, %v709
  %v718 = vsub.f32 0.0, %v710
  %v719 = vsub.f32 0.0, %v711
  %v720 = vsub.f32 0.0, %v712
  %v721 = vmul.f32 %v713, 1.442695
  %v722 = vpow.pop %v721
  %v723 = vmul.f32 %v714, 1.442695
  %v724 = vpow.pop %v723
  %v725 = vmul.f32 %v715, 1.442695
  %v726 = vpow.pop %v725
  %v727 = vmul.f32 %v716, 1.442695
  %v728 = vpow.pop %v727
  %v729 = vmul.f32 %v717, 1.442695
  %v730 = vpow.pop %v729
  %v731 = vmul.f32 %v718, 1.442695
  %v732 = vpow.pop %v731
  %v733 = vmul.f32 %v719, 1.442695
  %v734 = vpow.pop %v733
  %v735 = vmul.f32 %v720, 1.442695
  %v736 = vpow.pop %v735
  %v737 = vsel %vm560, %v530, -inf
  %738 = vmax.xlane.f32.xlu0 %v737
  %v739 = vpop.xlane.xlu0 %738
  %v740 = vsel %vm560, %v533, -inf
  %741 = vmax.xlane.f32.xlu0 %v740
  %v742 = vpop.xlane.xlu0 %741
  %v743 = vsel %vm560, %v538, -inf
  %744 = vmax.xlane.f32.xlu0 %v743
  %v745 = vpop.xlane.xlu0 %744
  %v746 = vsel %vm560, %v541, -inf
  %747 = vmax.xlane.f32.xlu0 %v746
  %v748 = vpop.xlane.xlu0 %747
  %v749 = vsel %vm560, %v546, -inf
  %750 = vmax.xlane.f32.xlu0 %v749
  %v751 = vpop.xlane.xlu0 %750
  %v752 = vsel %vm560, %v549, -inf
  %753 = vmax.xlane.f32.xlu0 %v752
  %v754 = vpop.xlane.xlu0 %753
  %v755 = vsel %vm560, %v554, -inf
  %756 = vmax.xlane.f32.xlu0 %v755
  %v757 = vpop.xlane.xlu0 %756
  %v758 = vsel %vm560, %v557, -inf
  %759 = vmax.xlane.f32.xlu0 %v758
  %v760 = vpop.xlane.xlu0 %759
  %v761 = vsub.f32 %v530, %v739
  %v762 = vsub.f32 %v533, %v742
  %v763 = vsub.f32 %v538, %v745
  %v764 = vsub.f32 %v541, %v748
  %v765 = vsub.f32 %v546, %v751
  %v766 = vsub.f32 %v549, %v754
  %v767 = vsub.f32 %v554, %v757
  %v768 = vsub.f32 %v557, %v760
  %v769 = vmul.f32 %v761, 1.442695
  %v770 = vpow.pop %v769
  %v771 = vmul.f32 %v762, 1.442695
  %v772 = vpow.pop %v771
  %v773 = vmul.f32 %v763, 1.442695
  %v774 = vpow.pop %v773
  %v775 = vmul.f32 %v764, 1.442695
  %v776 = vpow.pop %v775
  %v777 = vmul.f32 %v765, 1.442695
  %v778 = vpow.pop %v777
  %v779 = vmul.f32 %v766, 1.442695
  %v780 = vpow.pop %v779
  %v781 = vmul.f32 %v767, 1.442695
  %v782 = vpow.pop %v781
  %v783 = vmul.f32 %v768, 1.442695
  %v784 = vpow.pop %v783
  %v785 = vsel %vm560, %v770, 0.0
  %786 = vadd.xlane.f32.xlu0 %v785
  %v787 = vpop.xlane.xlu0 %786
  %v788 = vsel %vm560, %v772, 0.0
  %789 = vadd.xlane.f32.xlu0 %v788
  %v790 = vpop.xlane.xlu0 %789
  %v791 = vsel %vm560, %v774, 0.0
  %792 = vadd.xlane.f32.xlu0 %v791
  %v793 = vpop.xlane.xlu0 %792
  %v794 = vsel %vm560, %v776, 0.0
  %795 = vadd.xlane.f32.xlu0 %v794
  %v796 = vpop.xlane.xlu0 %795
  %v797 = vsel %vm560, %v778, 0.0
  %798 = vadd.xlane.f32.xlu0 %v797
  %v799 = vpop.xlane.xlu0 %798
  %v800 = vsel %vm560, %v780, 0.0
  %801 = vadd.xlane.f32.xlu0 %v800
  %v802 = vpop.xlane.xlu0 %801
  %v803 = vsel %vm560, %v782, 0.0
  %804 = vadd.xlane.f32.xlu0 %v803
  %v805 = vpop.xlane.xlu0 %804
  %v806 = vsel %vm560, %v784, 0.0
  %807 = vadd.xlane.f32.xlu0 %v806
  %v808 = vpop.xlane.xlu0 %807
  %v809 = vlog2.pop %v787
  %v810 = vmul.f32 %v809, 0.6931472
  %v811 = vlog2.pop %v790
  %v812 = vmul.f32 %v811, 0.6931472
  %v813 = vlog2.pop %v793
  %v814 = vmul.f32 %v813, 0.6931472
  %v815 = vlog2.pop %v796
  %v816 = vmul.f32 %v815, 0.6931472
  %v817 = vlog2.pop %v799
  %v818 = vmul.f32 %v817, 0.6931472
  %v819 = vlog2.pop %v802
  %v820 = vmul.f32 %v819, 0.6931472
  %v821 = vlog2.pop %v805
  %v822 = vmul.f32 %v821, 0.6931472
  %v823 = vlog2.pop %v808
  %v824 = vmul.f32 %v823, 0.6931472
  %v825 = vsub.f32 %v761, %v810
  %v826 = vsub.f32 %v762, %v812
  %v827 = vsub.f32 %v763, %v814
  %v828 = vsub.f32 %v764, %v816
  %v829 = vsub.f32 %v765, %v818
  %v830 = vsub.f32 %v766, %v820
  %v831 = vsub.f32 %v767, %v822
  %v832 = vsub.f32 %v768, %v824
  %v833 = vrcp.pop %v787
  %v834 = vrcp.pop %v790
  %v835 = vrcp.pop %v793
  %v836 = vrcp.pop %v796
  %v837 = vrcp.pop %v799
  %v838 = vrcp.pop %v802
  %v839 = vrcp.pop %v805
  %v840 = vrcp.pop %v808
  %v841 = vmul.f32 %v770, %v833
  %v842 = vmul.f32 %v772, %v834
  %v843 = vmul.f32 %v774, %v835
  %v844 = vmul.f32 %v776, %v836
  %v845 = vmul.f32 %v778, %v837
  %v846 = vmul.f32 %v780, %v838
  %v847 = vmul.f32 %v782, %v839
  %v848 = vmul.f32 %v784, %v840
  %v849 = vmul.f32 %v841, %v825
  %v850 = vmul.f32 %v842, %v826
  %v851 = vmul.f32 %v843, %v827
  %v852 = vmul.f32 %v844, %v828
  %v853 = vmul.f32 %v845, %v829
  %v854 = vmul.f32 %v846, %v830
  %v855 = vmul.f32 %v847, %v831
  %v856 = vmul.f32 %v848, %v832
  %v857 = vsel %vm560, %v849, 0.0
  %858 = vadd.xlane.f32.xlu0 %v857
  %v859 = vpop.xlane.xlu0 %858
  %v860 = vsel %vm560, %v850, 0.0
  %861 = vadd.xlane.f32.xlu0 %v860
  %v862 = vpop.xlane.xlu0 %861
  %v863 = vsel %vm560, %v851, 0.0
  %864 = vadd.xlane.f32.xlu0 %v863
  %v865 = vpop.xlane.xlu0 %864
  %v866 = vsel %vm560, %v852, 0.0
  %867 = vadd.xlane.f32.xlu0 %v866
  %v868 = vpop.xlane.xlu0 %867
  %v869 = vsel %vm560, %v853, 0.0
  %870 = vadd.xlane.f32.xlu0 %v869
  %v871 = vpop.xlane.xlu0 %870
  %v872 = vsel %vm560, %v854, 0.0
  %873 = vadd.xlane.f32.xlu0 %v872
  %v874 = vpop.xlane.xlu0 %873
  %v875 = vsel %vm560, %v855, 0.0
  %876 = vadd.xlane.f32.xlu0 %v875
  %v877 = vpop.xlane.xlu0 %876
  %v878 = vsel %vm560, %v856, 0.0
  %879 = vadd.xlane.f32.xlu0 %v878
  %v880 = vpop.xlane.xlu0 %879
  %v881 = vsub.f32 0.0, %v859
  %v882 = vsub.f32 0.0, %v862
  %v883 = vsub.f32 0.0, %v865
  %v884 = vsub.f32 0.0, %v868
  %v885 = vsub.f32 0.0, %v871
  %v886 = vsub.f32 0.0, %v874
  %v887 = vsub.f32 0.0, %v877
  %v888 = vsub.f32 0.0, %v880
  %v889 = vsub.f32 0.0, %v881
  %v890 = vsub.f32 0.0, %v882
  %v891 = vsub.f32 0.0, %v883
  %v892 = vsub.f32 0.0, %v884
  %v893 = vsub.f32 0.0, %v885
  %v894 = vsub.f32 0.0, %v886
  %v895 = vsub.f32 0.0, %v887
  %v896 = vsub.f32 0.0, %v888
  %v897 = vmul.f32 %v889, 1.442695
  %v898 = vpow.pop %v897
  %v899 = vmul.f32 %v890, 1.442695
  %v900 = vpow.pop %v899
  %v901 = vmul.f32 %v891, 1.442695
  %v902 = vpow.pop %v901
  %v903 = vmul.f32 %v892, 1.442695
  %v904 = vpow.pop %v903
  %v905 = vmul.f32 %v893, 1.442695
  %v906 = vpow.pop %v905
  %v907 = vmul.f32 %v894, 1.442695
  %v908 = vpow.pop %v907
  %v909 = vmul.f32 %v895, 1.442695
  %v910 = vpow.pop %v909
  %v911 = vmul.f32 %v896, 1.442695
  %v912 = vpow.pop %v911
  %v913 = vadd.f32 %v898, %v722
  %v914 = vadd.f32 %v900, %v724
  %v915 = vadd.f32 %v902, %v726
  %v916 = vadd.f32 %v904, %v728
  %v917 = vadd.f32 %v906, %v730
  %v918 = vadd.f32 %v908, %v732
  %v919 = vadd.f32 %v910, %v734
  %v920 = vadd.f32 %v912, %v736
  %v921 = vrcp.pop %v913
  %v922 = vrcp.pop %v914
  %v923 = vrcp.pop %v915
  %v924 = vrcp.pop %v916
  %v925 = vrcp.pop %v917
  %v926 = vrcp.pop %v918
  %v927 = vrcp.pop %v919
  %v928 = vrcp.pop %v920
  %v929 = vmul.f32 %v898, %v921
  %v930 = vmul.f32 %v900, %v922
  %v931 = vmul.f32 %v902, %v923
  %v932 = vmul.f32 %v904, %v924
  %v933 = vmul.f32 %v906, %v925
  %v934 = vmul.f32 %v908, %v926
  %v935 = vmul.f32 %v910, %v927
  %v936 = vmul.f32 %v912, %v928
  %v937 = vmul.f32 %v722, %v921
  %v938 = vmul.f32 %v724, %v922
  %v939 = vmul.f32 %v726, %v923
  %v940 = vmul.f32 %v728, %v924
  %v941 = vmul.f32 %v730, %v925
  %v942 = vmul.f32 %v732, %v926
  %v943 = vmul.f32 %v734, %v927
  %v944 = vmul.f32 %v736, %v928
  %953 = vrot.lane.b32.xlu0 %v270, 96
  %v954 = vpop.permute.xlu0 %953
  %955 = vrot.lane.b32.xlu0 %v273, 96
  %v956 = vpop.permute.xlu0 %955
  %957 = vrot.lane.b32.xlu0 %v278, 96
  %v958 = vpop.permute.xlu0 %957
  %959 = vrot.lane.b32.xlu0 %v281, 96
  %v960 = vpop.permute.xlu0 %959
  %961 = vrot.lane.b32.xlu0 %v286, 96
  %v962 = vpop.permute.xlu0 %961
  %963 = vrot.lane.b32.xlu0 %v289, 96
  %v964 = vpop.permute.xlu0 %963
  %965 = vrot.lane.b32.xlu0 %v294, 96
  %v966 = vpop.permute.xlu0 %965
  %967 = vrot.lane.b32.xlu0 %v297, 96
  %v968 = vpop.permute.xlu0 %967
  %v977 = vadd.f32 %v164, %v954
  %v978 = vadd.f32 %v168, %v956
  %v979 = vadd.f32 %v174, %v958
  %v980 = vadd.f32 %v178, %v960
  %v981 = vadd.f32 %v184, %v962
  %v982 = vadd.f32 %v188, %v964
  %v983 = vadd.f32 %v194, %v966
  %v984 = vadd.f32 %v198, %v968
  %v985 = vpack.c.bf16 %v978, %v977
  %v986 = vpack.c.bf16 %v980, %v979
  %v987 = vpack.c.bf16 %v982, %v981
  %v988 = vpack.c.bf16 %v984, %v983
  %v989 = vld [vmem:[%s10] sm:$0xf]
  %v990 = vld [vmem:[%s10 + $0x4] sm:$0xf]
  %v991 = vld [vmem:[%s10 + $0x8] sm:$0xf]
  %v992 = vld [vmem:[%s10 + $0xc] sm:$0xf]
  %v993 = vld [vmem:[%s11] sm:$0x1]
  %v995 = vlaneseq
  %v996 = vshrl.u32 %v995, 7
  %v997 = vsub.s32 0, %v996
  %v998 = vrot.slane %v993, %v997
  %v1004 = vunpack.c.l.b16 %v989
  %v1005 = vunpack.c.l.b16 %v990
  %v1006 = vunpack.c.l.b16 %v991
  %v1007 = vunpack.c.l.b16 %v992
  %v1008 = vpack.c.b16 %v1005, %v1004
  %v1009 = vpack.c.b16 %v1007, %v1006
  %v1013 = vsel %vm114, %v985, 0
  %v1016 = vsel %vm114, %v986, 0
  %v1019 = vsel %vm114, %v987, 0
  %v1022 = vsel %vm114, %v988, 0
  %1024 = vmatprep.subr.bf16.mxu0 0
  %1025 = vmatpush1.bf16.msra.mxu0 %v1008
  %1026 = vmatprep.subr.bf16.mxu0 0
  %1027 = vmatpush1.bf16.msra.mxu0 %v1009
  %1028 = vmatprep.subr.bf16.mxu0 0
  %1029 = vmatpush1.bf16.msra.mxu0 0
  %1030 = vmatprep.subr.bf16.mxu0 0
  %1031 = vmatpush1.bf16.msra.mxu0 0
  %1032 = vmatprep.subr.bf16.mxu0 0
  %1033 = vmatpush1.bf16.msra.mxu0 0
  %1034 = vmatprep.subr.bf16.mxu0 0
  %1035 = vmatpush1.bf16.msra.mxu0 0
  %1036 = vmatprep.subr.bf16.mxu0 0
  %1037 = vmatpush1.bf16.msra.mxu0 0
  %1038 = vmatprep.subr.bf16.mxu0 0
  %1039 = vmatpush1.bf16.msra.mxu0 0
  %1040 = vmatprep.subr.bf16.mxu0 0
  %1041 = vmatpush1.bf16.msra.mxu0 0
  %1042 = vmatprep.subr.bf16.mxu0 0
  %1043 = vmatpush1.bf16.msra.mxu0 0
  %1044 = vmatprep.subr.bf16.mxu0 0
  %1045 = vmatpush1.bf16.msra.mxu0 0
  %1046 = vmatprep.subr.bf16.mxu0 0
  %1047 = vmatpush1.bf16.msra.mxu0 0
  %1048 = vmatprep.subr.bf16.mxu0 0
  %1049 = vmatpush1.bf16.msra.mxu0 0
  %1050 = vmatprep.subr.bf16.mxu0 0
  %1051 = vmatpush1.bf16.msra.mxu0 0
  %1052 = vmatprep.subr.bf16.mxu0 0
  %1053 = vmatpush1.bf16.msra.mxu0 0
  %1054 = vmatprep.subr.bf16.mxu0 0
  %1055 = vmatpush1.bf16.msra.mxu0 0
  %1056 = vmatprep.mubr.bf16.mxu0 0
  %1057 = vmatmul.mubr.bf16.gmra.mrb[0].mxu0 %v1013
  %v1058 = vpop.f32.mrb[0].mxu0
  %v1059 = vadd.f32 %v998, %v1058
  %v1060 = vpop.f32.mrb[0].mxu0
  %v1061 = vpop.f32.mrb[0].mxu0
  %v1062 = vadd.f32 %v998, %v1061
  %v1063 = vpop.f32.mrb[0].mxu0
  %1064 = vmatprep.mubr.bf16.mxu0 0
  %1065 = vmatmul.mubr.bf16.gmra.mrb[0].mxu0 %v1016
  %v1066 = vpop.f32.mrb[0].mxu0
  %v1067 = vadd.f32 %v998, %v1066
  %v1068 = vpop.f32.mrb[0].mxu0
  %v1069 = vpop.f32.mrb[0].mxu0
  %v1070 = vadd.f32 %v998, %v1069
  %v1071 = vpop.f32.mrb[0].mxu0
  %1072 = vmatprep.mubr.bf16.mxu0 0
  %1073 = vmatmul.mubr.bf16.gmra.mrb[0].mxu0 %v1019
  %v1074 = vpop.f32.mrb[0].mxu0
  %v1075 = vadd.f32 %v998, %v1074
  %v1076 = vpop.f32.mrb[0].mxu0
  %v1077 = vpop.f32.mrb[0].mxu0
  %v1078 = vadd.f32 %v998, %v1077
  %v1079 = vpop.f32.mrb[0].mxu0
  %1080 = vmatprep.mubr.bf16.mxu0 0
  %1081 = vmatmul.mubr.bf16.gmra.mrb[0].mxu0 %v1022
  %v1082 = vpop.f32.mrb[0].mxu0
  %v1083 = vadd.f32 %v998, %v1082
  %v1084 = vpop.f32.mrb[0].mxu0
  %v1085 = vpop.f32.mrb[0].mxu0
  %v1086 = vadd.f32 %v998, %v1085
  %v1087 = vpop.f32.mrb[0].mxu0
  %1088 = vdwg.mxu0
  %v1089 = vsub.f32 0.0, %v1059
  %v1090 = vsub.f32 0.0, %v1062
  %v1091 = vsub.f32 0.0, %v1067
  %v1092 = vsub.f32 0.0, %v1070
  %v1093 = vsub.f32 0.0, %v1075
  %v1094 = vsub.f32 0.0, %v1078
  %v1095 = vsub.f32 0.0, %v1083
  %v1096 = vsub.f32 0.0, %v1086
  %v1097 = vmul.f32 %v1089, 1.442695
  %v1098 = vpow.pop %v1097
  %v1099 = vmul.f32 %v1090, 1.442695
  %v1100 = vpow.pop %v1099
  %v1101 = vmul.f32 %v1091, 1.442695
  %v1102 = vpow.pop %v1101
  %v1103 = vmul.f32 %v1092, 1.442695
  %v1104 = vpow.pop %v1103
  %v1105 = vmul.f32 %v1093, 1.442695
  %v1106 = vpow.pop %v1105
  %v1107 = vmul.f32 %v1094, 1.442695
  %v1108 = vpow.pop %v1107
  %v1109 = vmul.f32 %v1095, 1.442695
  %v1110 = vpow.pop %v1109
  %v1111 = vmul.f32 %v1096, 1.442695
  %v1112 = vpow.pop %v1111
  %v1113 = vadd.f32 %v1098, 1.0
  %v1114 = vadd.f32 %v1100, 1.0
  %v1115 = vadd.f32 %v1102, 1.0
  %v1116 = vadd.f32 %v1104, 1.0
  %v1117 = vadd.f32 %v1106, 1.0
  %v1118 = vadd.f32 %v1108, 1.0
  %v1119 = vadd.f32 %v1110, 1.0
  %v1120 = vadd.f32 %v1112, 1.0
  %v1121 = vrcp.pop %v1113
  %v1122 = vrcp.pop %v1114
  %v1123 = vrcp.pop %v1115
  %v1124 = vrcp.pop %v1116
  %v1125 = vrcp.pop %v1117
  %v1126 = vrcp.pop %v1118
  %v1127 = vrcp.pop %v1119
  %v1128 = vrcp.pop %v1120
  %v1129 = vmul.f32 %v977, %v1121
  %v1130 = vmul.f32 %v978, %v1122
  %v1131 = vmul.f32 %v979, %v1123
  %v1132 = vmul.f32 %v980, %v1124
  %v1133 = vmul.f32 %v981, %v1125
  %v1134 = vmul.f32 %v982, %v1126
  %v1135 = vmul.f32 %v983, %v1127
  %v1136 = vmul.f32 %v984, %v1128
  %v1137 = vmax.f32 %v1129, 0.0
  %v1138 = vmax.f32 %v1130, 0.0
  %v1139 = vmax.f32 %v1131, 0.0
  %v1140 = vmax.f32 %v1132, 0.0
  %v1141 = vmax.f32 %v1133, 0.0
  %v1142 = vmax.f32 %v1134, 0.0
  %v1143 = vmax.f32 %v1135, 0.0
  %v1144 = vmax.f32 %v1136, 0.0
  %1153 = vrot.lane.b32.xlu0 %v977, 96
  %v1154 = vpop.permute.xlu0 %1153
  %1155 = vrot.lane.b32.xlu0 %v978, 96
  %v1156 = vpop.permute.xlu0 %1155
  %1157 = vrot.lane.b32.xlu0 %v979, 96
  %v1158 = vpop.permute.xlu0 %1157
  %1159 = vrot.lane.b32.xlu0 %v980, 96
  %v1160 = vpop.permute.xlu0 %1159
  %1161 = vrot.lane.b32.xlu0 %v981, 96
  %v1162 = vpop.permute.xlu0 %1161
  %1163 = vrot.lane.b32.xlu0 %v982, 96
  %v1164 = vpop.permute.xlu0 %1163
  %1165 = vrot.lane.b32.xlu0 %v983, 96
  %v1166 = vpop.permute.xlu0 %1165
  %1167 = vrot.lane.b32.xlu0 %v984, 96
  %v1168 = vpop.permute.xlu0 %1167
  %v1177 = vadd.f32 %v1137, %v1154
  %v1178 = vadd.f32 %v1138, %v1156
  %v1179 = vadd.f32 %v1139, %v1158
  %v1180 = vadd.f32 %v1140, %v1160
  %v1181 = vadd.f32 %v1141, %v1162
  %v1182 = vadd.f32 %v1142, %v1164
  %v1183 = vadd.f32 %v1143, %v1166
  %v1184 = vadd.f32 %v1144, %v1168
  %v1185 = vpack.c.bf16 %v1178, %v1177
  %v1186 = vpack.c.bf16 %v1180, %v1179
  %v1187 = vpack.c.bf16 %v1182, %v1181
  %v1188 = vpack.c.bf16 %v1184, %v1183
  %v1189 = vld [vmem:[%s12] sm:$0xf]
  %v1190 = vld [vmem:[%s12 + $0x4] sm:$0xf]
  %v1191 = vld [vmem:[%s12 + $0x8] sm:$0xf]
  %v1192 = vld [vmem:[%s12 + $0xc] sm:$0xf]
  %v1193 = vld [vmem:[%s13] sm:$0x1]
  %v1195 = vlaneseq
  %v1196 = vshrl.u32 %v1195, 7
  %v1197 = vsub.s32 0, %v1196
  %v1198 = vrot.slane %v1193, %v1197
  %v1204 = vunpack.c.l.b16 %v1189
  %v1205 = vunpack.c.l.b16 %v1190
  %v1206 = vunpack.c.l.b16 %v1191
  %v1207 = vunpack.c.l.b16 %v1192
  %v1208 = vpack.c.b16 %v1205, %v1204
  %v1209 = vpack.c.b16 %v1207, %v1206
  %v1213 = vsel %vm114, %v1185, 0
  %v1216 = vsel %vm114, %v1186, 0
  %v1219 = vsel %vm114, %v1187, 0
  %v1222 = vsel %vm114, %v1188, 0
  %1224 = vmatprep.subr.bf16.mxu0 0
  %1225 = vmatpush1.bf16.msra.mxu0 %v1208
  %1226 = vmatprep.subr.bf16.mxu0 0
  %1227 = vmatpush1.bf16.msra.mxu0 %v1209
  %1228 = vmatprep.subr.bf16.mxu0 0
  %1229 = vmatpush1.bf16.msra.mxu0 0
  %1230 = vmatprep.subr.bf16.mxu0 0
  %1231 = vmatpush1.bf16.msra.mxu0 0
  %1232 = vmatprep.subr.bf16.mxu0 0
  %1233 = vmatpush1.bf16.msra.mxu0 0
  %1234 = vmatprep.subr.bf16.mxu0 0
  %1235 = vmatpush1.bf16.msra.mxu0 0
  %1236 = vmatprep.subr.bf16.mxu0 0
  %1237 = vmatpush1.bf16.msra.mxu0 0
  %1238 = vmatprep.subr.bf16.mxu0 0
  %1239 = vmatpush1.bf16.msra.mxu0 0
  %1240 = vmatprep.subr.bf16.mxu0 0
  %1241 = vmatpush1.bf16.msra.mxu0 0
  %1242 = vmatprep.subr.bf16.mxu0 0
  %1243 = vmatpush1.bf16.msra.mxu0 0
  %1244 = vmatprep.subr.bf16.mxu0 0
  %1245 = vmatpush1.bf16.msra.mxu0 0
  %1246 = vmatprep.subr.bf16.mxu0 0
  %1247 = vmatpush1.bf16.msra.mxu0 0
  %1248 = vmatprep.subr.bf16.mxu0 0
  %1249 = vmatpush1.bf16.msra.mxu0 0
  %1250 = vmatprep.subr.bf16.mxu0 0
  %1251 = vmatpush1.bf16.msra.mxu0 0
  %1252 = vmatprep.subr.bf16.mxu0 0
  %1253 = vmatpush1.bf16.msra.mxu0 0
  %1254 = vmatprep.subr.bf16.mxu0 0
  %1255 = vmatpush1.bf16.msra.mxu0 0
  %1256 = vmatprep.mubr.bf16.mxu0 0
  %1257 = vmatmul.mubr.bf16.gmra.mrb[0].mxu0 %v1213
  %v1258 = vpop.f32.mrb[0].mxu0
  %v1259 = vadd.f32 %v1198, %v1258
  %v1260 = vpop.f32.mrb[0].mxu0
  %v1261 = vpop.f32.mrb[0].mxu0
  %v1262 = vadd.f32 %v1198, %v1261
  %v1263 = vpop.f32.mrb[0].mxu0
  %1264 = vmatprep.mubr.bf16.mxu0 0
  %1265 = vmatmul.mubr.bf16.gmra.mrb[0].mxu0 %v1216
  %v1266 = vpop.f32.mrb[0].mxu0
  %v1267 = vadd.f32 %v1198, %v1266
  %v1268 = vpop.f32.mrb[0].mxu0
  %v1269 = vpop.f32.mrb[0].mxu0
  %v1270 = vadd.f32 %v1198, %v1269
  %v1271 = vpop.f32.mrb[0].mxu0
  %1272 = vmatprep.mubr.bf16.mxu0 0
  %1273 = vmatmul.mubr.bf16.gmra.mrb[0].mxu0 %v1219
  %v1274 = vpop.f32.mrb[0].mxu0
  %v1275 = vadd.f32 %v1198, %v1274
  %v1276 = vpop.f32.mrb[0].mxu0
  %v1277 = vpop.f32.mrb[0].mxu0
  %v1278 = vadd.f32 %v1198, %v1277
  %v1279 = vpop.f32.mrb[0].mxu0
  %1280 = vmatprep.mubr.bf16.mxu0 0
  %1281 = vmatmul.mubr.bf16.gmra.mrb[0].mxu0 %v1222
  %v1282 = vpop.f32.mrb[0].mxu0
  %v1283 = vadd.f32 %v1198, %v1282
  %v1284 = vpop.f32.mrb[0].mxu0
  %v1285 = vpop.f32.mrb[0].mxu0
  %v1286 = vadd.f32 %v1198, %v1285
  %v1287 = vpop.f32.mrb[0].mxu0
  %1288 = vdwg.mxu0
  %v1289 = vmax.f32 %v1259, 0.0
  %v1290 = vmax.f32 %v1262, 0.0
  %v1291 = vmax.f32 %v1267, 0.0
  %v1292 = vmax.f32 %v1270, 0.0
  %v1293 = vmax.f32 %v1275, 0.0
  %v1294 = vmax.f32 %v1278, 0.0
  %v1295 = vmax.f32 %v1283, 0.0
  %v1296 = vmax.f32 %v1286, 0.0
  %v1297 = vpack.c.bf16 %v1290, %v1289
  %v1298 = vpack.c.bf16 %v1292, %v1291
  %v1299 = vpack.c.bf16 %v1294, %v1293
  %v1300 = vpack.c.bf16 %v1296, %v1295
  %v1301 = vld [vmem:[%s14] sm:$0xf]
  %v1302 = vld [vmem:[%s14 + $0x4] sm:$0xf]
  %v1303 = vld [vmem:[%s14 + $0x8] sm:$0xf]
  %v1304 = vld [vmem:[%s14 + $0xc] sm:$0xf]
  %v1305 = vld [vmem:[%s14 + $0x10] sm:$0xf]
  %v1306 = vld [vmem:[%s14 + $0x14] sm:$0xf]
  %v1307 = vld [vmem:[%s14 + $0x18] sm:$0xf]
  %v1308 = vld [vmem:[%s14 + $0x1c] sm:$0xf]
  %v1309 = vld [vmem:[%s14 + $0x20] sm:$0xf]
  %v1310 = vld [vmem:[%s14 + $0x24] sm:$0xf]
  %v1311 = vld [vmem:[%s14 + $0x28] sm:$0xf]
  %v1312 = vld [vmem:[%s14 + $0x2c] sm:$0xf]
  %v1313 = vld [vmem:[%s14 + $0x30] sm:$0xf]
  %v1314 = vld [vmem:[%s14 + $0x34] sm:$0xf]
  %v1315 = vld [vmem:[%s14 + $0x38] sm:$0xf]
  %v1316 = vld [vmem:[%s14 + $0x3c] sm:$0xf]
  %v1317 = vld [vmem:[%s15] sm:$0x1]
  %v1319 = vlaneseq
  %v1320 = vshrl.u32 %v1319, 7
  %v1321 = vsub.s32 0, %v1320
  %v1322 = vrot.slane %v1317, %v1321
  %v1340 = vunpack.c.l.b16 %v1301
  %v1341 = vunpack.c.l.b16 %v1302
  %v1342 = vunpack.c.l.b16 %v1303
  %v1343 = vunpack.c.l.b16 %v1304
  %v1344 = vunpack.c.l.b16 %v1305
  %v1345 = vunpack.c.l.b16 %v1306
  %v1346 = vunpack.c.l.b16 %v1307
  %v1347 = vunpack.c.l.b16 %v1308
  %v1348 = vunpack.c.l.b16 %v1309
  %v1349 = vunpack.c.l.b16 %v1310
  %v1350 = vunpack.c.l.b16 %v1311
  %v1351 = vunpack.c.l.b16 %v1312
  %v1352 = vunpack.c.l.b16 %v1313
  %v1353 = vunpack.c.l.b16 %v1314
  %v1354 = vunpack.c.l.b16 %v1315
  %v1355 = vunpack.c.l.b16 %v1316
  %v1356 = vpack.c.b16 %v1341, %v1340
  %v1357 = vpack.c.b16 %v1343, %v1342
  %v1358 = vpack.c.b16 %v1345, %v1344
  %v1359 = vpack.c.b16 %v1347, %v1346
  %v1360 = vpack.c.b16 %v1349, %v1348
  %v1361 = vpack.c.b16 %v1351, %v1350
  %v1362 = vpack.c.b16 %v1353, %v1352
  %v1363 = vpack.c.b16 %v1355, %v1354
  %1372 = vmatprep.subr.bf16.mxu0 0
  %1373 = vmatpush1.bf16.msra.mxu0 %v1356
  %1374 = vmatprep.subr.bf16.mxu0 0
  %1375 = vmatpush1.bf16.msra.mxu0 %v1357
  %1376 = vmatprep.subr.bf16.mxu0 0
  %1377 = vmatpush1.bf16.msra.mxu0 %v1358
  %1378 = vmatprep.subr.bf16.mxu0 0
  %1379 = vmatpush1.bf16.msra.mxu0 %v1359
  %1380 = vmatprep.subr.bf16.mxu0 0
  %1381 = vmatpush1.bf16.msra.mxu0 %v1360
  %1382 = vmatprep.subr.bf16.mxu0 0
  %1383 = vmatpush1.bf16.msra.mxu0 %v1361
  %1384 = vmatprep.subr.bf16.mxu0 0
  %1385 = vmatpush1.bf16.msra.mxu0 %v1362
  %1386 = vmatprep.subr.bf16.mxu0 0
  %1387 = vmatpush1.bf16.msra.mxu0 %v1363
  %1388 = vmatprep.subr.bf16.mxu0 0
  %1389 = vmatpush1.bf16.msra.mxu0 0
  %1390 = vmatprep.subr.bf16.mxu0 0
  %1391 = vmatpush1.bf16.msra.mxu0 0
  %1392 = vmatprep.subr.bf16.mxu0 0
  %1393 = vmatpush1.bf16.msra.mxu0 0
  %1394 = vmatprep.subr.bf16.mxu0 0
  %1395 = vmatpush1.bf16.msra.mxu0 0
  %1396 = vmatprep.subr.bf16.mxu0 0
  %1397 = vmatpush1.bf16.msra.mxu0 0
  %1398 = vmatprep.subr.bf16.mxu0 0
  %1399 = vmatpush1.bf16.msra.mxu0 0
  %1400 = vmatprep.subr.bf16.mxu0 0
  %1401 = vmatpush1.bf16.msra.mxu0 0
  %1402 = vmatprep.subr.bf16.mxu0 0
  %1403 = vmatpush1.bf16.msra.mxu0 0
  %1404 = vmatprep.mubr.bf16.mxu0 0
  %1405 = vmatmul.mubr.bf16.gmra.mrb[0].mxu0 %v1297
  %v1406 = vpop.f32.mrb[0].mxu0
  %v1407 = vadd.f32 %v1322, %v1406
  %v1408 = vpop.f32.mrb[0].mxu0
  %v1409 = vpop.f32.mrb[0].mxu0
  %v1410 = vadd.f32 %v1322, %v1409
  %v1411 = vpop.f32.mrb[0].mxu0
  %1412 = vmatprep.mubr.bf16.mxu0 0
  %1413 = vmatmul.mubr.bf16.gmra.mrb[0].mxu0 %v1298
  %v1414 = vpop.f32.mrb[0].mxu0
  %v1415 = vadd.f32 %v1322, %v1414
  %v1416 = vpop.f32.mrb[0].mxu0
  %v1417 = vpop.f32.mrb[0].mxu0
  %v1418 = vadd.f32 %v1322, %v1417
  %v1419 = vpop.f32.mrb[0].mxu0
  %1420 = vmatprep.mubr.bf16.mxu0 0
  %1421 = vmatmul.mubr.bf16.gmra.mrb[0].mxu0 %v1299
  %v1422 = vpop.f32.mrb[0].mxu0
  %v1423 = vadd.f32 %v1322, %v1422
  %v1424 = vpop.f32.mrb[0].mxu0
  %v1425 = vpop.f32.mrb[0].mxu0
  %v1426 = vadd.f32 %v1322, %v1425
  %v1427 = vpop.f32.mrb[0].mxu0
  %1428 = vmatprep.mubr.bf16.mxu0 0
  %1429 = vmatmul.mubr.bf16.gmra.mrb[0].mxu0 %v1300
  %v1430 = vpop.f32.mrb[0].mxu0
  %v1431 = vadd.f32 %v1322, %v1430
  %v1432 = vpop.f32.mrb[0].mxu0
  %v1433 = vpop.f32.mrb[0].mxu0
  %v1434 = vadd.f32 %v1322, %v1433
  %v1435 = vpop.f32.mrb[0].mxu0
  %1436 = vdwg.mxu0
  %v1437 = vmul.f32 %v929, %v530
  %v1438 = vmul.f32 %v930, %v533
  %v1439 = vmul.f32 %v931, %v538
  %v1440 = vmul.f32 %v932, %v541
  %v1441 = vmul.f32 %v933, %v546
  %v1442 = vmul.f32 %v934, %v549
  %v1443 = vmul.f32 %v935, %v554
  %v1444 = vmul.f32 %v936, %v557
  %v1445 = vmul.f32 %v937, %v418
  %v1446 = vmul.f32 %v938, %v421
  %v1447 = vmul.f32 %v939, %v426
  %v1448 = vmul.f32 %v940, %v429
  %v1449 = vmul.f32 %v941, %v434
  %v1450 = vmul.f32 %v942, %v437
  %v1451 = vmul.f32 %v943, %v442
  %v1452 = vmul.f32 %v944, %v445
  %v1453 = vadd.f32 %v1437, %v1445
  %v1454 = vadd.f32 %v1438, %v1446
  %v1455 = vadd.f32 %v1439, %v1447
  %v1456 = vadd.f32 %v1440, %v1448
  %v1457 = vadd.f32 %v1441, %v1449
  %v1458 = vadd.f32 %v1442, %v1450
  %v1459 = vadd.f32 %v1443, %v1451
  %v1460 = vadd.f32 %v1444, %v1452
  %1469 = vrot.lane.b32.xlu0 %v1407, 8
  %v1470 = vpop.permute.xlu0 %1469
  %1471 = vrot.lane.b32.xlu0 %v1410, 8
  %v1472 = vpop.permute.xlu0 %1471
  %1473 = vrot.lane.b32.xlu0 %v1415, 8
  %v1474 = vpop.permute.xlu0 %1473
  %1475 = vrot.lane.b32.xlu0 %v1418, 8
  %v1476 = vpop.permute.xlu0 %1475
  %1477 = vrot.lane.b32.xlu0 %v1423, 8
  %v1478 = vpop.permute.xlu0 %1477
  %1479 = vrot.lane.b32.xlu0 %v1426, 8
  %v1480 = vpop.permute.xlu0 %1479
  %1481 = vrot.lane.b32.xlu0 %v1431, 8
  %v1482 = vpop.permute.xlu0 %1481
  %1483 = vrot.lane.b32.xlu0 %v1434, 8
  %v1484 = vpop.permute.xlu0 %1483
  %1501 = vrot.lane.b32.xlu0 %v1453, 16
  %v1502 = vpop.permute.xlu0 %1501
  %1503 = vrot.lane.b32.xlu0 %v1454, 16
  %v1504 = vpop.permute.xlu0 %1503
  %1505 = vrot.lane.b32.xlu0 %v1455, 16
  %v1506 = vpop.permute.xlu0 %1505
  %1507 = vrot.lane.b32.xlu0 %v1456, 16
  %v1508 = vpop.permute.xlu0 %1507
  %1509 = vrot.lane.b32.xlu0 %v1457, 16
  %v1510 = vpop.permute.xlu0 %1509
  %1511 = vrot.lane.b32.xlu0 %v1458, 16
  %v1512 = vpop.permute.xlu0 %1511
  %1513 = vrot.lane.b32.xlu0 %v1459, 16
  %v1514 = vpop.permute.xlu0 %1513
  %1515 = vrot.lane.b32.xlu0 %v1460, 16
  %v1516 = vpop.permute.xlu0 %1515
  %v1525 = vsel %vm560, %v418, %v1470
  %v1526 = vsel %vm560, %v421, %v1472
  %v1527 = vsel %vm560, %v426, %v1474
  %v1528 = vsel %vm560, %v429, %v1476
  %v1529 = vsel %vm560, %v434, %v1478
  %v1530 = vsel %vm560, %v437, %v1480
  %v1531 = vsel %vm560, %v442, %v1482
  %v1532 = vsel %vm560, %v445, %v1484
  %vm1533 = vcmask 130048
  %v1534 = vsel %vm1533, %v1525, %v1502
  %v1535 = vsel %vm1533, %v1526, %v1504
  %v1536 = vsel %vm1533, %v1527, %v1506
  %v1537 = vsel %vm1533, %v1528, %v1508
  %v1538 = vsel %vm1533, %v1529, %v1510
  %v1539 = vsel %vm1533, %v1530, %v1512
  %v1540 = vsel %vm1533, %v1531, %v1514
  %v1541 = vsel %vm1533, %v1532, %v1516
  %vm1542 = vcmask 195584
  %1543 = vst.msk [vmem:[%s16] sm:$0xff] %vm1542, %v1534
  %1544 = vst.msk [vmem:[%s16 + $0x8] sm:$0xff] %vm1542, %v1535
  %1545 = vst.msk [vmem:[%s16 + $0x10] sm:$0xff] %vm1542, %v1536
  %1546 = vst.msk [vmem:[%s16 + $0x18] sm:$0xff] %vm1542, %v1537
  %1547 = vst.msk [vmem:[%s16 + $0x20] sm:$0xff] %vm1542, %v1538
  %1548 = vst.msk [vmem:[%s16 + $0x28] sm:$0xff] %vm1542, %v1539
  %1549 = vst.msk [vmem:[%s16 + $0x30] sm:$0xff] %vm1542, %v1540
  %1550 = vst.msk [vmem:[%s16 + $0x38] sm:$0xff] %vm1542, %v1541
  // Predicated region
  $region66: #{tpu_custom_call.1} parent=0 // pred_check
    _
  $region67: #{tpu_custom_call.1} parent=0 // pred_check_branch
    %1552 = sbr.rel (0) target = $region69
  $region68: #{tpu_custom_call.1} parent=0 // pred_region
    _
  $region69: #{tpu_custom_call.1} parent=0 // pred_fallthru
    _
  // Predicated region
  $region70: #{tpu_custom_call.1} parent=0 // pred_check
    _
  $region71: #{tpu_custom_call.1} parent=0 // pred_check_branch
    %1554 = sbr.rel (0) target = $region73
  $region72: #{tpu_custom_call.1} parent=0 // pred_region
    _
  $region73: #{tpu_custom_call.1} parent=0 // pred_fallthru
    _

</llo_original>
